<compile_context>
chip_gen: v7x
topology: tpu7x:2x2x1
jax: 0.10.0
libtpu: 0.0.40
codegen_flags: <defaults>
</compile_context>

<pallas_src>
import numpy as np
import jax
import jax.numpy as jnp
from jax import lax
from jax.experimental import pallas as pl
from jax.experimental.pallas import tpu as pltpu

ODE_UNFOLDS = 6
EPSILON = 1e-8


# ----------------------------------------------------------------------------
# Host-side parameter packing: one (R, k*U) f32 slab, every plane lane-replicated
# for k batch rows. Matrices stay in their original (src, dst) orientation; the
# src axis lands on sublanes so sum-over-src is a sublane reduction.
# ----------------------------------------------------------------------------
def _pack_ltc_slab(params, U, S, k):
    kU = k * U
    f32 = np.float32

    def a(name):
        return np.asarray(params[name], f32)

    def tile_lanes(arr):            # (rows, U) -> (rows, kU): one copy per row segment
        return np.tile(np.asarray(arr, f32), (1, k))

    def flat_row(vec):              # (U,) -> (1, kU)
        return np.tile(np.asarray(vec, f32), k)[None, :]

    w, mask, erev = a("w"), a("mask"), a("erev")
    sw, smask, serev = a("sensory_w"), a("sensory_mask"), a("sensory_erev")
    gleak, vleak, cm = a("gleak"), a("vleak"), a("cm")
    cm_t = cm * float(ODE_UNFOLDS)                 # elapsed_time = 1 / ode_unfolds

    lane_unit = np.arange(kU) % U                  # lane -> unit index within segment
    lane_seg = np.arange(kU) // U                  # lane -> packed batch row (segment)
    mask_diag = (np.arange(U)[:, None] == lane_unit[None, :]).astype(f32)   # (U, kU)
    block_ones = (lane_seg[:, None] == lane_seg[None, :]).astype(f32)       # (kU, kU)

    sections = [
        ("sigma", tile_lanes(a("sigma"))),                 # (U, kU)  src x (row, dst)
        ("mu", tile_lanes(a("mu"))),
        ("wnum", tile_lanes(w * mask * erev)),             # mask/erev folded on host
        ("wden", tile_lanes(w * mask)),
        ("maskd", mask_diag),
        ("ssig", tile_lanes(a("sensory_sigma"))),          # (S, kU)
        ("smu", tile_lanes(a("sensory_mu"))),
        ("swnum", tile_lanes(sw * smask * serev)),
        ("swden", tile_lanes(sw * smask)),
        ("iw", np.tile(a("input_w")[:, None], (1, kU))),   # (S, kU)
        ("ib", np.tile(a("input_b")[:, None], (1, kU))),
        ("cmt", flat_row(cm_t)),                           # (1, kU)
        ("bnum", flat_row(gleak * vleak)),
        ("bden", flat_row(cm_t + gleak)),
        ("blk1", block_ones),                              # (kU, kU) segment selector
    ]
    offsets, chunks, off = {}, [], 0
    for name, arr in sections:
        offsets[name] = off
        n = arr.shape[0]
        pad = (-n) % 8                                     # sublane-aligned sections
        chunks.append(arr)
        if pad:
            chunks.append(np.zeros((pad, kU), f32))
        off += n + pad
    return np.concatenate(chunks, axis=0), offsets


# ----------------------------------------------------------------------------
# Kernel: one grid step handles G groups of k lane-packed batch rows each.
#   x_ref   : (G, S, kU)   x_ref[g, s, r*U+u] = x[g*k+r, s]   (host-broadcast layout)
#   slab_ref: (R, kU)      merged parameter slab (see _pack_ltc_slab)
#   out_ref : (G, 1, kU)   out_ref[g, 0, r*U+u] = final v of batch row g*k+r, unit u
# ----------------------------------------------------------------------------
def _make_ltc_kernel(U, S, k, G, off, n_unfolds=ODE_UNFOLDS):
    kU = k * U

    def kernel(x_ref, slab_ref, out_ref):
        # Loop-invariant parameter tiles (loaded once per grid step, broadcasts hoisted)
        sigma_p = slab_ref[pl.ds(off["sigma"], U), :]
        mu_p = slab_ref[pl.ds(off["mu"], U), :]
        wnum_p = slab_ref[pl.ds(off["wnum"], U), :]
        wden_p = slab_ref[pl.ds(off["wden"], U), :]
        mask_d = slab_ref[pl.ds(off["maskd"], U), :]
        s_sig = slab_ref[pl.ds(off["ssig"], S), :]
        s_mu = slab_ref[pl.ds(off["smu"], S), :]
        s_wnum = slab_ref[pl.ds(off["swnum"], S), :]
        s_wden = slab_ref[pl.ds(off["swden"], S), :]
        iw_p = slab_ref[pl.ds(off["iw"], S), :]
        ib_p = slab_ref[pl.ds(off["ib"], S), :]
        cmt = slab_ref[pl.ds(off["cmt"], 1), :]
        base_num = slab_ref[pl.ds(off["bnum"], 1), :]
        base_den = slab_ref[pl.ds(off["bden"], 1), :]

        def group_body(g, carry):
            # --- sensory synapses: once per group, loop-invariant over the unfolds ---
            xin = x_ref[g] * iw_p + ib_p                                     # (S, kU)
            s_pre = jax.nn.sigmoid(s_sig * (xin - s_mu))                     # (S, kU)
            num_c = base_num + jnp.sum(s_wnum * s_pre, axis=0, keepdims=True)  # (1, kU)
            den_c = base_den + jnp.sum(s_wden * s_pre, axis=0, keepdims=True)

            # --- ODE unfolds on the lane-packed flat state (k rows per pass) ---
            v = jnp.zeros((1, kU), jnp.float32)          # lane r*U+u = v[row r, unit u]
            for _ in range(n_unfolds):
                # Spread each row's state across the src sublanes of its lane segment:
                # vb[s, r*U+d] = v[r, s]. Done via a 0/1 block-selector matmul on the
                # idle MXU; bf16 hi/lo split keeps it exact even if the f32 matmul
                # truncates its operands to bf16.
                blk1 = slab_ref[pl.ds(off["blk1"], kU), :]   # per-iter load bounds live range
                m = v * mask_d                                # (U, kU), one value per column
                hi = m.astype(jnp.bfloat16).astype(jnp.float32)
                lo = m - hi
                vb = (jnp.dot(hi, blk1, preferred_element_type=jnp.float32) +
                      jnp.dot(lo, blk1, preferred_element_type=jnp.float32))  # (U, kU)

                pre = jax.nn.sigmoid(sigma_p * (vb - mu_p))   # (U, kU): 3 vregs / 5 rows
                num = num_c + cmt * v + jnp.sum(wnum_p * pre, axis=0, keepdims=True)
                den = den_c + jnp.sum(wden_p * pre, axis=0, keepdims=True)

                d = den + EPSILON
                r = pl.reciprocal(d, approx=True)             # single EUP push
                r = r * (2.0 - d * r)                         # one Newton step (VPU, ~f32 exact)
                v = num * r

            out_ref[g] = v                                    # lane-dense (1, kU) write
            return carry

        lax.fori_loop(0, G, group_body, 0)

    return kernel


# ----------------------------------------------------------------------------
# Wrapper: host packing + pallas_call with a parallel batch-group grid.
# ----------------------------------------------------------------------------
def ncp_forward(x, params, *, rows_per_block=80):
    """x: (B, in_features) f32. Returns (B, n_actions) f32."""
    x = jnp.asarray(x, jnp.float32)
    B, S = x.shape
    U = np.asarray(params["w"]).shape[0]
    M = np.asarray(params["output_w"]).shape[-1]

    k = max(1, 128 // U)                 # batch rows packed into the lane axis
    kU = k * U

    slab_np, off = _pack_ltc_slab(params, U, S, k)
    slab = jnp.asarray(slab_np)
    R = slab_np.shape[0]

    # group / grid sizing: G groups (= G*k rows) per grid step; pad so blocks are full
    ng_raw = -(-B // k)
    G = min(max(1, rows_per_block // k), ng_raw)
    NG = -(-ng_raw // G) * G
    Bp = NG * k

    # lane-broadcast observation layout: x_b[g, s, r*U+u] = x[g*k+r, s]
    x_pad = jnp.pad(x, ((0, Bp - B), (0, 0)))
    xg = x_pad.reshape(NG, k, S).transpose(0, 2, 1)          # (NG, S, k)
    x_b = jnp.repeat(xg, U, axis=2)                          # (NG, S, kU)

    kernel = _make_ltc_kernel(U, S, k, G, off)
    out = pl.pallas_call(
        kernel,
        grid=(NG // G,),
        in_specs=[
            pl.BlockSpec((G, S, kU), lambda i: (i, 0, 0)),
            pl.BlockSpec((R, kU), lambda i: (0, 0)),         # constant index -> DMA'd once
        ],
        out_specs=pl.BlockSpec((G, 1, kU), lambda i: (i, 0, 0)),
        out_shape=jax.ShapeDtypeStruct((NG, 1, kU), jnp.float32),
        compiler_params=pltpu.CompilerParams(dimension_semantics=("parallel",)),
    )(x_b, slab)

    # host-side layout plumbing: unpack full lane-dense state, then motor affine
    v_all = out.reshape(NG * k, U)[:B]                       # (B, U)
    ow = jnp.asarray(np.asarray(params["output_w"], np.float32))
    ob = jnp.asarray(np.asarray(params["output_b"], np.float32))
    return v_all[:, :M] * ow + ob


# ----------------------------------------------------------------------------
# Deterministic synthetic NCP wiring + LTCCell parameter init (plain numpy glue).
# Structure (sensory->inter->command->(recurrent)->motor) follows kncp.wirings.NCP;
# exact random draws may differ from the kncp implementation but are deterministic.
# ----------------------------------------------------------------------------
def build_ncp_wiring(sensory, inter, command, motor,
                     sensory_fanout, inter_fanout, recurrent_command, motor_fanin,
                     seed):
    units = inter + command + motor
    rng = np.random.RandomState(seed)
    adj = np.zeros((units, units), np.float32)          # (src, dst)
    sens_adj = np.zeros((sensory, units), np.float32)   # (src, dst)

    motor_ids = list(range(0, motor))
    command_ids = list(range(motor, motor + command))
    inter_ids = list(range(motor + command, units))

    # sensory -> inter
    unreachable = set(inter_ids)
    for src in range(sensory):
        for dest in rng.choice(inter_ids, size=min(sensory_fanout, inter), replace=False):
            unreachable.discard(int(dest))
            sens_adj[src, dest] = float(rng.choice([-1, 1]))
    fanin = int(np.clip(sensory * sensory_fanout // max(inter, 1), 1, sensory))
    for dest in sorted(unreachable):
        for src in rng.choice(sensory, size=fanin, replace=False):
            sens_adj[src, dest] = float(rng.choice([-1, 1]))

    # inter -> command
    unreachable = set(command_ids)
    for src in inter_ids:
        for dest in rng.choice(command_ids, size=min(inter_fanout, command), replace=False):
            unreachable.discard(int(dest))
            adj[src, dest] = float(rng.choice([-1, 1]))
    fanin = int(np.clip(inter * inter_fanout // max(command, 1), 1, command))
    for dest in sorted(unreachable):
        for src in rng.choice(inter_ids, size=fanin, replace=False):
            adj[src, dest] = float(rng.choice([-1, 1]))

    # recurrent command -> command
    for _ in range(recurrent_command):
        src = int(rng.choice(command_ids))
        dest = int(rng.choice(command_ids))
        adj[src, dest] = float(rng.choice([-1, 1]))

    # command -> motor
    unreachable = set(command_ids)
    for dest in motor_ids:
        for src in rng.choice(command_ids, size=min(motor_fanin, command), replace=False):
            unreachable.discard(int(src))
            adj[src, dest] = float(rng.choice([-1, 1]))
    fanout = int(np.clip(motor * motor_fanin // max(command, 1), 1, motor))
    for src in sorted(unreachable):
        for dest in rng.choice(motor_ids, size=fanout, replace=False):
            adj[src, dest] = float(rng.choice([-1, 1]))

    return adj, sens_adj


def init_ltc_params(sensory, units, motor, adj, sens_adj, seed=0):
    rng = np.random.RandomState(seed)
    p = {}
    p["gleak"] = rng.uniform(0.001, 1.0, (units,)).astype(np.float32)
    p["vleak"] = rng.uniform(-0.2, 0.2, (units,)).astype(np.float32)
    p["cm"] = rng.uniform(0.4, 0.6, (units,)).astype(np.float32)
    p["sigma"] = rng.uniform(3.0, 8.0, (units, units)).astype(np.float32)
    p["mu"] = rng.uniform(0.3, 0.8, (units, units)).astype(np.float32)
    p["w"] = rng.uniform(0.001, 1.0, (units, units)).astype(np.float32)
    p["erev"] = adj.astype(np.float32)
    p["mask"] = np.abs(adj).astype(np.float32)
    p["sensory_sigma"] = rng.uniform(3.0, 8.0, (sensory, units)).astype(np.float32)
    p["sensory_mu"] = rng.uniform(0.3, 0.8, (sensory, units)).astype(np.float32)
    p["sensory_w"] = rng.uniform(0.001, 1.0, (sensory, units)).astype(np.float32)
    p["sensory_erev"] = sens_adj.astype(np.float32)
    p["sensory_mask"] = np.abs(sens_adj).astype(np.float32)
    p["input_w"] = np.ones((sensory,), np.float32)
    p["input_b"] = np.zeros((sensory,), np.float32)
    p["output_w"] = np.ones((motor,), np.float32)
    p["output_b"] = np.zeros((motor,), np.float32)
    return p


def ncp_forward_reference(x, p):
    """Pure-numpy reference of the LTCCell single step (original, unfused math)."""
    x = np.asarray(x, np.float32)
    B = x.shape[0]
    U = p["w"].shape[0]
    M = p["output_w"].shape[0]
    xi = x * p["input_w"] + p["input_b"]
    sig = lambda z: 1.0 / (1.0 + np.exp(-z))
    s_act = p["sensory_w"][None] * sig(p["sensory_sigma"][None] * (xi[:, :, None] - p["sensory_mu"][None]))
    s_act = s_act * p["sensory_mask"][None]
    w_num_s = np.sum(s_act * p["sensory_erev"][None], axis=1)
    w_den_s = np.sum(s_act, axis=1)
    cm_t = p["cm"] * ODE_UNFOLDS
    v = np.zeros((B, U), np.float32)
    for _ in range(ODE_UNFOLDS):
        act = p["w"][None] * sig(p["sigma"][None] * (v[:, :, None] - p["mu"][None]))
        act = act * p["mask"][None]
        w_num = np.sum(act * p["erev"][None], axis=1) + w_num_s
        w_den = np.sum(act, axis=1) + w_den_s
        num = cm_t * v + p["gleak"] * p["vleak"] + w_num
        den = cm_t + p["gleak"] + w_den
        v = num / (den + EPSILON)
    return v[:, :M] * p["output_w"] + p["output_b"]


if __name__ == "__main__":
    # cart-pole sizes: in_features=4 (observation), n_actions=2; small batch=8
    # (packs into 2 lane groups of k=5 rows, exercising padding + the group loop).
    batch = 8
    in_features = 4
    n_actions = 2
    config = dict(inter_neurons=12, command_neurons=8, sensory_fanout=4,
                  inter_fanout=4, recurrent_command_synapses=4, motor_fanin=4,
                  wiring_seed=22222)
    units = config["inter_neurons"] + config["command_neurons"] + n_actions

    adj, sens_adj = build_ncp_wiring(
        in_features, config["inter_neurons"], config["command_neurons"], n_actions,
        config["sensory_fanout"], config["inter_fanout"],
        config["recurrent_command_synapses"], config["motor_fanin"],
        seed=config["wiring_seed"])
    params = init_ltc_params(in_features, units, n_actions, adj, sens_adj, seed=0)

    key = jax.random.PRNGKey(0)
    x = jax.random.normal(key, (batch, in_features), dtype=jnp.float32)

    out = ncp_forward(x, params)
    out = jax.block_until_ready(out)

    ref = ncp_forward_reference(np.asarray(x), params)
    assert out.shape == (batch, n_actions)
    assert np.allclose(np.asarray(out), ref, rtol=2e-3, atol=1e-4), (
        f"mismatch: pallas={np.asarray(out)} ref={ref}")
    print("KERNEL_OK")
</pallas_src>

<mosaic_0001>
module attributes {stable_mosaic.version = 11 : i64} {
  func.func @kernel(%arg0: i32, %arg1: memref<2x4x110xf32, #tpu.memory_space<vmem>>, %arg2: memref<304x110xf32, #tpu.memory_space<vmem>>, %arg3: memref<2x1x110xf32, #tpu.memory_space<vmem>>) attributes {dimension_semantics = [#tpu.dimension_semantics<parallel>], iteration_bounds = array<i64: 1>, scalar_prefetch = 0 : i64, scratch_operands = 0 : i64, tpu.core_type = #tpu.core_type<tc>, window_params = [{transform_indices = @transform_0, window_bounds = array<i64: 2, 4, 110>}, {pipeline_mode = #tpu.pipeline_mode<synchronous>, transform_indices = @transform_1, window_bounds = array<i64: 304, 110>}, {transform_indices = @transform_2, window_bounds = array<i64: 2, 1, 110>}]} {
    %c0 = arith.constant 0 : index
    %c0_0 = arith.constant 0 : index
    %0 = vector.load %arg2[%c0, %c0_0] : memref<304x110xf32, #tpu.memory_space<vmem>>, vector<22x110xf32>
    %c24 = arith.constant 24 : index
    %c0_1 = arith.constant 0 : index
    %1 = vector.load %arg2[%c24, %c0_1] : memref<304x110xf32, #tpu.memory_space<vmem>>, vector<22x110xf32>
    %c48 = arith.constant 48 : index
    %c0_2 = arith.constant 0 : index
    %2 = vector.load %arg2[%c48, %c0_2] : memref<304x110xf32, #tpu.memory_space<vmem>>, vector<22x110xf32>
    %c72 = arith.constant 72 : index
    %c0_3 = arith.constant 0 : index
    %3 = vector.load %arg2[%c72, %c0_3] : memref<304x110xf32, #tpu.memory_space<vmem>>, vector<22x110xf32>
    %c96 = arith.constant 96 : index
    %c0_4 = arith.constant 0 : index
    %4 = vector.load %arg2[%c96, %c0_4] : memref<304x110xf32, #tpu.memory_space<vmem>>, vector<22x110xf32>
    %c120 = arith.constant 120 : index
    %c0_5 = arith.constant 0 : index
    %5 = vector.load %arg2[%c120, %c0_5] : memref<304x110xf32, #tpu.memory_space<vmem>>, vector<4x110xf32>
    %c128 = arith.constant 128 : index
    %c0_6 = arith.constant 0 : index
    %6 = vector.load %arg2[%c128, %c0_6] : memref<304x110xf32, #tpu.memory_space<vmem>>, vector<4x110xf32>
    %c136 = arith.constant 136 : index
    %c0_7 = arith.constant 0 : index
    %7 = vector.load %arg2[%c136, %c0_7] : memref<304x110xf32, #tpu.memory_space<vmem>>, vector<4x110xf32>
    %c144 = arith.constant 144 : index
    %c0_8 = arith.constant 0 : index
    %8 = vector.load %arg2[%c144, %c0_8] : memref<304x110xf32, #tpu.memory_space<vmem>>, vector<4x110xf32>
    %c152 = arith.constant 152 : index
    %c0_9 = arith.constant 0 : index
    %9 = vector.load %arg2[%c152, %c0_9] : memref<304x110xf32, #tpu.memory_space<vmem>>, vector<4x110xf32>
    %c160 = arith.constant 160 : index
    %c0_10 = arith.constant 0 : index
    %10 = vector.load %arg2[%c160, %c0_10] : memref<304x110xf32, #tpu.memory_space<vmem>>, vector<4x110xf32>
    %c168 = arith.constant 168 : index
    %c0_11 = arith.constant 0 : index
    %11 = vector.load %arg2[%c168, %c0_11] : memref<304x110xf32, #tpu.memory_space<vmem>>, vector<1x110xf32>
    %c176 = arith.constant 176 : index
    %c0_12 = arith.constant 0 : index
    %12 = vector.load %arg2[%c176, %c0_12] : memref<304x110xf32, #tpu.memory_space<vmem>>, vector<1x110xf32>
    %c184 = arith.constant 184 : index
    %c0_13 = arith.constant 0 : index
    %13 = vector.load %arg2[%c184, %c0_13] : memref<304x110xf32, #tpu.memory_space<vmem>>, vector<1x110xf32>
    %c0_i32 = arith.constant 0 : i32
    %c2_i32 = arith.constant 2 : i32
    %14 = arith.addi %c0_i32, %c2_i32 : i32
    %c1_i32 = arith.constant 1 : i32
    scf.for %arg4 = %c0_i32 to %14 step %c1_i32  : i32 {
      %15 = arith.index_cast %arg4 : i32 to index
      %c0_15 = arith.constant 0 : index
      %c0_16 = arith.constant 0 : index
      %16 = vector.load %arg1[%15, %c0_15, %c0_16] : memref<2x4x110xf32, #tpu.memory_space<vmem>>, vector<1x4x110xf32>
      %17 = vector.shape_cast %16 : vector<1x4x110xf32> to vector<4x110xf32>
      %18 = arith.mulf %17, %9 : vector<4x110xf32>
      %19 = arith.addf %18, %10 : vector<4x110xf32>
      %20 = arith.subf %19, %6 : vector<4x110xf32>
      %21 = arith.mulf %5, %20 : vector<4x110xf32>
      %22 = arith.negf %21 : vector<4x110xf32>
      %23 = math.exp %22 : vector<4x110xf32>
      %cst = arith.constant 1.000000e+00 : f32
      %24 = vector.broadcast %cst : f32 to vector<4x110xf32>
      %25 = arith.addf %24, %23 : vector<4x110xf32>
      %26 = arith.divf %24, %25 : vector<4x110xf32>
      %27 = arith.mulf %7, %26 : vector<4x110xf32>
      %cst_17 = arith.constant dense<0.000000e+00> : vector<110xf32>
      %28 = vector.multi_reduction <add>, %27, %cst_17 [0] : vector<4x110xf32> to vector<110xf32>
      %29 = vector.shape_cast %28 : vector<110xf32> to vector<1x110xf32>
      %30 = arith.addf %12, %29 : vector<1x110xf32>
      %31 = arith.mulf %8, %26 : vector<4x110xf32>
      %cst_18 = arith.constant dense<0.000000e+00> : vector<110xf32>
      %32 = vector.multi_reduction <add>, %31, %cst_18 [0] : vector<4x110xf32> to vector<110xf32>
      %33 = vector.shape_cast %32 : vector<110xf32> to vector<1x110xf32>
      %34 = arith.addf %13, %33 : vector<1x110xf32>
      %cst_19 = arith.constant 0.000000e+00 : f32
      %35 = vector.broadcast %cst_19 : f32 to vector<1x110xf32>
      %c192 = arith.constant 192 : index
      %c0_20 = arith.constant 0 : index
      %36 = vector.load %arg2[%c192, %c0_20] : memref<304x110xf32, #tpu.memory_space<vmem>>, vector<110x110xf32>
      %37 = vector.broadcast %35 : vector<1x110xf32> to vector<22x110xf32>
      %38 = arith.mulf %37, %4 : vector<22x110xf32>
      %39 = arith.truncf %38 : vector<22x110xf32> to vector<22x110xbf16>
      %40 = arith.extf %39 : vector<22x110xbf16> to vector<22x110xf32>
      %41 = arith.subf %38, %40 : vector<22x110xf32>
      %cst_21 = arith.constant dense<0.000000e+00> : vector<22x110xf32>
      %42 = tpu.matmul %40, %36, %cst_21 {dimension_numbers = #tpu.dot_dimension_numbers<[1], [0], [0], [1], [0, 0, 1, 1], [], []>} : vector<22x110xf32>, vector<110x110xf32>, vector<22x110xf32> -> vector<22x110xf32>
      %cst_22 = arith.constant dense<0.000000e+00> : vector<22x110xf32>
      %43 = tpu.matmul %41, %36, %cst_22 {dimension_numbers = #tpu.dot_dimension_numbers<[1], [0], [0], [1], [0, 0, 1, 1], [], []>} : vector<22x110xf32>, vector<110x110xf32>, vector<22x110xf32> -> vector<22x110xf32>
      %44 = arith.addf %42, %43 : vector<22x110xf32>
      %45 = arith.subf %44, %1 : vector<22x110xf32>
      %46 = arith.mulf %0, %45 : vector<22x110xf32>
      %47 = arith.negf %46 : vector<22x110xf32>
      %48 = math.exp %47 : vector<22x110xf32>
      %cst_23 = arith.constant 1.000000e+00 : f32
      %49 = vector.broadcast %cst_23 : f32 to vector<22x110xf32>
      %50 = arith.addf %49, %48 : vector<22x110xf32>
      %51 = arith.divf %49, %50 : vector<22x110xf32>
      %52 = arith.mulf %11, %35 : vector<1x110xf32>
      %53 = arith.addf %30, %52 : vector<1x110xf32>
      %54 = arith.mulf %2, %51 : vector<22x110xf32>
      %cst_24 = arith.constant dense<0.000000e+00> : vector<110xf32>
      %55 = vector.multi_reduction <add>, %54, %cst_24 [0] : vector<22x110xf32> to vector<110xf32>
      %56 = vector.shape_cast %55 : vector<110xf32> to vector<1x110xf32>
      %57 = arith.addf %53, %56 : vector<1x110xf32>
      %58 = arith.mulf %3, %51 : vector<22x110xf32>
      %cst_25 = arith.constant dense<0.000000e+00> : vector<110xf32>
      %59 = vector.multi_reduction <add>, %58, %cst_25 [0] : vector<22x110xf32> to vector<110xf32>
      %60 = vector.shape_cast %59 : vector<110xf32> to vector<1x110xf32>
      %61 = arith.addf %34, %60 : vector<1x110xf32>
      %cst_26 = arith.constant 9.99999993E-9 : f32
      %62 = vector.broadcast %cst_26 : f32 to vector<1x110xf32>
      %63 = arith.addf %61, %62 : vector<1x110xf32>
      %64 = tpu.reciprocal %63 {approx = true} : vector<1x110xf32> -> vector<1x110xf32>
      %65 = arith.mulf %63, %64 : vector<1x110xf32>
      %cst_27 = arith.constant 2.000000e+00 : f32
      %66 = vector.broadcast %cst_27 : f32 to vector<1x110xf32>
      %67 = arith.subf %66, %65 : vector<1x110xf32>
      %68 = arith.mulf %64, %67 : vector<1x110xf32>
      %69 = arith.mulf %57, %68 : vector<1x110xf32>
      %c192_28 = arith.constant 192 : index
      %c0_29 = arith.constant 0 : index
      %70 = vector.load %arg2[%c192_28, %c0_29] : memref<304x110xf32, #tpu.memory_space<vmem>>, vector<110x110xf32>
      %71 = vector.broadcast %69 : vector<1x110xf32> to vector<22x110xf32>
      %72 = arith.mulf %71, %4 : vector<22x110xf32>
      %73 = arith.truncf %72 : vector<22x110xf32> to vector<22x110xbf16>
      %74 = arith.extf %73 : vector<22x110xbf16> to vector<22x110xf32>
      %75 = arith.subf %72, %74 : vector<22x110xf32>
      %cst_30 = arith.constant dense<0.000000e+00> : vector<22x110xf32>
      %76 = tpu.matmul %74, %70, %cst_30 {dimension_numbers = #tpu.dot_dimension_numbers<[1], [0], [0], [1], [0, 0, 1, 1], [], []>} : vector<22x110xf32>, vector<110x110xf32>, vector<22x110xf32> -> vector<22x110xf32>
      %cst_31 = arith.constant dense<0.000000e+00> : vector<22x110xf32>
      %77 = tpu.matmul %75, %70, %cst_31 {dimension_numbers = #tpu.dot_dimension_numbers<[1], [0], [0], [1], [0, 0, 1, 1], [], []>} : vector<22x110xf32>, vector<110x110xf32>, vector<22x110xf32> -> vector<22x110xf32>
      %78 = arith.addf %76, %77 : vector<22x110xf32>
      %79 = arith.subf %78, %1 : vector<22x110xf32>
      %80 = arith.mulf %0, %79 : vector<22x110xf32>
      %81 = arith.negf %80 : vector<22x110xf32>
      %82 = math.exp %81 : vector<22x110xf32>
      %cst_32 = arith.constant 1.000000e+00 : f32
      %83 = vector.broadcast %cst_32 : f32 to vector<22x110xf32>
      %84 = arith.addf %83, %82 : vector<22x110xf32>
      %85 = arith.divf %83, %84 : vector<22x110xf32>
      %86 = arith.mulf %11, %69 : vector<1x110xf32>
      %87 = arith.addf %30, %86 : vector<1x110xf32>
      %88 = arith.mulf %2, %85 : vector<22x110xf32>
      %cst_33 = arith.constant dense<0.000000e+00> : vector<110xf32>
      %89 = vector.multi_reduction <add>, %88, %cst_33 [0] : vector<22x110xf32> to vector<110xf32>
      %90 = vector.shape_cast %89 : vector<110xf32> to vector<1x110xf32>
      %91 = arith.addf %87, %90 : vector<1x110xf32>
      %92 = arith.mulf %3, %85 : vector<22x110xf32>
      %cst_34 = arith.constant dense<0.000000e+00> : vector<110xf32>
      %93 = vector.multi_reduction <add>, %92, %cst_34 [0] : vector<22x110xf32> to vector<110xf32>
      %94 = vector.shape_cast %93 : vector<110xf32> to vector<1x110xf32>
      %95 = arith.addf %34, %94 : vector<1x110xf32>
      %cst_35 = arith.constant 9.99999993E-9 : f32
      %96 = vector.broadcast %cst_35 : f32 to vector<1x110xf32>
      %97 = arith.addf %95, %96 : vector<1x110xf32>
      %98 = tpu.reciprocal %97 {approx = true} : vector<1x110xf32> -> vector<1x110xf32>
      %99 = arith.mulf %97, %98 : vector<1x110xf32>
      %cst_36 = arith.constant 2.000000e+00 : f32
      %100 = vector.broadcast %cst_36 : f32 to vector<1x110xf32>
      %101 = arith.subf %100, %99 : vector<1x110xf32>
      %102 = arith.mulf %98, %101 : vector<1x110xf32>
      %103 = arith.mulf %91, %102 : vector<1x110xf32>
      %c192_37 = arith.constant 192 : index
      %c0_38 = arith.constant 0 : index
      %104 = vector.load %arg2[%c192_37, %c0_38] : memref<304x110xf32, #tpu.memory_space<vmem>>, vector<110x110xf32>
      %105 = vector.broadcast %103 : vector<1x110xf32> to vector<22x110xf32>
      %106 = arith.mulf %105, %4 : vector<22x110xf32>
      %107 = arith.truncf %106 : vector<22x110xf32> to vector<22x110xbf16>
      %108 = arith.extf %107 : vector<22x110xbf16> to vector<22x110xf32>
      %109 = arith.subf %106, %108 : vector<22x110xf32>
      %cst_39 = arith.constant dense<0.000000e+00> : vector<22x110xf32>
      %110 = tpu.matmul %108, %104, %cst_39 {dimension_numbers = #tpu.dot_dimension_numbers<[1], [0], [0], [1], [0, 0, 1, 1], [], []>} : vector<22x110xf32>, vector<110x110xf32>, vector<22x110xf32> -> vector<22x110xf32>
      %cst_40 = arith.constant dense<0.000000e+00> : vector<22x110xf32>
      %111 = tpu.matmul %109, %104, %cst_40 {dimension_numbers = #tpu.dot_dimension_numbers<[1], [0], [0], [1], [0, 0, 1, 1], [], []>} : vector<22x110xf32>, vector<110x110xf32>, vector<22x110xf32> -> vector<22x110xf32>
      %112 = arith.addf %110, %111 : vector<22x110xf32>
      %113 = arith.subf %112, %1 : vector<22x110xf32>
      %114 = arith.mulf %0, %113 : vector<22x110xf32>
      %115 = arith.negf %114 : vector<22x110xf32>
      %116 = math.exp %115 : vector<22x110xf32>
      %cst_41 = arith.constant 1.000000e+00 : f32
      %117 = vector.broadcast %cst_41 : f32 to vector<22x110xf32>
      %118 = arith.addf %117, %116 : vector<22x110xf32>
      %119 = arith.divf %117, %118 : vector<22x110xf32>
      %120 = arith.mulf %11, %103 : vector<1x110xf32>
      %121 = arith.addf %30, %120 : vector<1x110xf32>
      %122 = arith.mulf %2, %119 : vector<22x110xf32>
      %cst_42 = arith.constant dense<0.000000e+00> : vector<110xf32>
      %123 = vector.multi_reduction <add>, %122, %cst_42 [0] : vector<22x110xf32> to vector<110xf32>
      %124 = vector.shape_cast %123 : vector<110xf32> to vector<1x110xf32>
      %125 = arith.addf %121, %124 : vector<1x110xf32>
      %126 = arith.mulf %3, %119 : vector<22x110xf32>
      %cst_43 = arith.constant dense<0.000000e+00> : vector<110xf32>
      %127 = vector.multi_reduction <add>, %126, %cst_43 [0] : vector<22x110xf32> to vector<110xf32>
      %128 = vector.shape_cast %127 : vector<110xf32> to vector<1x110xf32>
      %129 = arith.addf %34, %128 : vector<1x110xf32>
      %cst_44 = arith.constant 9.99999993E-9 : f32
      %130 = vector.broadcast %cst_44 : f32 to vector<1x110xf32>
      %131 = arith.addf %129, %130 : vector<1x110xf32>
      %132 = tpu.reciprocal %131 {approx = true} : vector<1x110xf32> -> vector<1x110xf32>
      %133 = arith.mulf %131, %132 : vector<1x110xf32>
      %cst_45 = arith.constant 2.000000e+00 : f32
      %134 = vector.broadcast %cst_45 : f32 to vector<1x110xf32>
      %135 = arith.subf %134, %133 : vector<1x110xf32>
      %136 = arith.mulf %132, %135 : vector<1x110xf32>
      %137 = arith.mulf %125, %136 : vector<1x110xf32>
      %c192_46 = arith.constant 192 : index
      %c0_47 = arith.constant 0 : index
      %138 = vector.load %arg2[%c192_46, %c0_47] : memref<304x110xf32, #tpu.memory_space<vmem>>, vector<110x110xf32>
      %139 = vector.broadcast %137 : vector<1x110xf32> to vector<22x110xf32>
      %140 = arith.mulf %139, %4 : vector<22x110xf32>
      %141 = arith.truncf %140 : vector<22x110xf32> to vector<22x110xbf16>
      %142 = arith.extf %141 : vector<22x110xbf16> to vector<22x110xf32>
      %143 = arith.subf %140, %142 : vector<22x110xf32>
      %cst_48 = arith.constant dense<0.000000e+00> : vector<22x110xf32>
      %144 = tpu.matmul %142, %138, %cst_48 {dimension_numbers = #tpu.dot_dimension_numbers<[1], [0], [0], [1], [0, 0, 1, 1], [], []>} : vector<22x110xf32>, vector<110x110xf32>, vector<22x110xf32> -> vector<22x110xf32>
      %cst_49 = arith.constant dense<0.000000e+00> : vector<22x110xf32>
      %145 = tpu.matmul %143, %138, %cst_49 {dimension_numbers = #tpu.dot_dimension_numbers<[1], [0], [0], [1], [0, 0, 1, 1], [], []>} : vector<22x110xf32>, vector<110x110xf32>, vector<22x110xf32> -> vector<22x110xf32>
      %146 = arith.addf %144, %145 : vector<22x110xf32>
      %147 = arith.subf %146, %1 : vector<22x110xf32>
      %148 = arith.mulf %0, %147 : vector<22x110xf32>
      %149 = arith.negf %148 : vector<22x110xf32>
      %150 = math.exp %149 : vector<22x110xf32>
      %cst_50 = arith.constant 1.000000e+00 : f32
      %151 = vector.broadcast %cst_50 : f32 to vector<22x110xf32>
      %152 = arith.addf %151, %150 : vector<22x110xf32>
      %153 = arith.divf %151, %152 : vector<22x110xf32>
      %154 = arith.mulf %11, %137 : vector<1x110xf32>
      %155 = arith.addf %30, %154 : vector<1x110xf32>
      %156 = arith.mulf %2, %153 : vector<22x110xf32>
      %cst_51 = arith.constant dense<0.000000e+00> : vector<110xf32>
      %157 = vector.multi_reduction <add>, %156, %cst_51 [0] : vector<22x110xf32> to vector<110xf32>
      %158 = vector.shape_cast %157 : vector<110xf32> to vector<1x110xf32>
      %159 = arith.addf %155, %158 : vector<1x110xf32>
      %160 = arith.mulf %3, %153 : vector<22x110xf32>
      %cst_52 = arith.constant dense<0.000000e+00> : vector<110xf32>
      %161 = vector.multi_reduction <add>, %160, %cst_52 [0] : vector<22x110xf32> to vector<110xf32>
      %162 = vector.shape_cast %161 : vector<110xf32> to vector<1x110xf32>
      %163 = arith.addf %34, %162 : vector<1x110xf32>
      %cst_53 = arith.constant 9.99999993E-9 : f32
      %164 = vector.broadcast %cst_53 : f32 to vector<1x110xf32>
      %165 = arith.addf %163, %164 : vector<1x110xf32>
      %166 = tpu.reciprocal %165 {approx = true} : vector<1x110xf32> -> vector<1x110xf32>
      %167 = arith.mulf %165, %166 : vector<1x110xf32>
      %cst_54 = arith.constant 2.000000e+00 : f32
      %168 = vector.broadcast %cst_54 : f32 to vector<1x110xf32>
      %169 = arith.subf %168, %167 : vector<1x110xf32>
      %170 = arith.mulf %166, %169 : vector<1x110xf32>
      %171 = arith.mulf %159, %170 : vector<1x110xf32>
      %c192_55 = arith.constant 192 : index
      %c0_56 = arith.constant 0 : index
      %172 = vector.load %arg2[%c192_55, %c0_56] : memref<304x110xf32, #tpu.memory_space<vmem>>, vector<110x110xf32>
      %173 = vector.broadcast %171 : vector<1x110xf32> to vector<22x110xf32>
      %174 = arith.mulf %173, %4 : vector<22x110xf32>
      %175 = arith.truncf %174 : vector<22x110xf32> to vector<22x110xbf16>
      %176 = arith.extf %175 : vector<22x110xbf16> to vector<22x110xf32>
      %177 = arith.subf %174, %176 : vector<22x110xf32>
      %cst_57 = arith.constant dense<0.000000e+00> : vector<22x110xf32>
      %178 = tpu.matmul %176, %172, %cst_57 {dimension_numbers = #tpu.dot_dimension_numbers<[1], [0], [0], [1], [0, 0, 1, 1], [], []>} : vector<22x110xf32>, vector<110x110xf32>, vector<22x110xf32> -> vector<22x110xf32>
      %cst_58 = arith.constant dense<0.000000e+00> : vector<22x110xf32>
      %179 = tpu.matmul %177, %172, %cst_58 {dimension_numbers = #tpu.dot_dimension_numbers<[1], [0], [0], [1], [0, 0, 1, 1], [], []>} : vector<22x110xf32>, vector<110x110xf32>, vector<22x110xf32> -> vector<22x110xf32>
      %180 = arith.addf %178, %179 : vector<22x110xf32>
      %181 = arith.subf %180, %1 : vector<22x110xf32>
      %182 = arith.mulf %0, %181 : vector<22x110xf32>
      %183 = arith.negf %182 : vector<22x110xf32>
      %184 = math.exp %183 : vector<22x110xf32>
      %cst_59 = arith.constant 1.000000e+00 : f32
      %185 = vector.broadcast %cst_59 : f32 to vector<22x110xf32>
      %186 = arith.addf %185, %184 : vector<22x110xf32>
      %187 = arith.divf %185, %186 : vector<22x110xf32>
      %188 = arith.mulf %11, %171 : vector<1x110xf32>
      %189 = arith.addf %30, %188 : vector<1x110xf32>
      %190 = arith.mulf %2, %187 : vector<22x110xf32>
      %cst_60 = arith.constant dense<0.000000e+00> : vector<110xf32>
      %191 = vector.multi_reduction <add>, %190, %cst_60 [0] : vector<22x110xf32> to vector<110xf32>
      %192 = vector.shape_cast %191 : vector<110xf32> to vector<1x110xf32>
      %193 = arith.addf %189, %192 : vector<1x110xf32>
      %194 = arith.mulf %3, %187 : vector<22x110xf32>
      %cst_61 = arith.constant dense<0.000000e+00> : vector<110xf32>
      %195 = vector.multi_reduction <add>, %194, %cst_61 [0] : vector<22x110xf32> to vector<110xf32>
      %196 = vector.shape_cast %195 : vector<110xf32> to vector<1x110xf32>
      %197 = arith.addf %34, %196 : vector<1x110xf32>
      %cst_62 = arith.constant 9.99999993E-9 : f32
      %198 = vector.broadcast %cst_62 : f32 to vector<1x110xf32>
      %199 = arith.addf %197, %198 : vector<1x110xf32>
      %200 = tpu.reciprocal %199 {approx = true} : vector<1x110xf32> -> vector<1x110xf32>
      %201 = arith.mulf %199, %200 : vector<1x110xf32>
      %cst_63 = arith.constant 2.000000e+00 : f32
      %202 = vector.broadcast %cst_63 : f32 to vector<1x110xf32>
      %203 = arith.subf %202, %201 : vector<1x110xf32>
      %204 = arith.mulf %200, %203 : vector<1x110xf32>
      %205 = arith.mulf %193, %204 : vector<1x110xf32>
      %c192_64 = arith.constant 192 : index
      %c0_65 = arith.constant 0 : index
      %206 = vector.load %arg2[%c192_64, %c0_65] : memref<304x110xf32, #tpu.memory_space<vmem>>, vector<110x110xf32>
      %207 = vector.broadcast %205 : vector<1x110xf32> to vector<22x110xf32>
      %208 = arith.mulf %207, %4 : vector<22x110xf32>
      %209 = arith.truncf %208 : vector<22x110xf32> to vector<22x110xbf16>
      %210 = arith.extf %209 : vector<22x110xbf16> to vector<22x110xf32>
      %211 = arith.subf %208, %210 : vector<22x110xf32>
      %cst_66 = arith.constant dense<0.000000e+00> : vector<22x110xf32>
      %212 = tpu.matmul %210, %206, %cst_66 {dimension_numbers = #tpu.dot_dimension_numbers<[1], [0], [0], [1], [0, 0, 1, 1], [], []>} : vector<22x110xf32>, vector<110x110xf32>, vector<22x110xf32> -> vector<22x110xf32>
      %cst_67 = arith.constant dense<0.000000e+00> : vector<22x110xf32>
      %213 = tpu.matmul %211, %206, %cst_67 {dimension_numbers = #tpu.dot_dimension_numbers<[1], [0], [0], [1], [0, 0, 1, 1], [], []>} : vector<22x110xf32>, vector<110x110xf32>, vector<22x110xf32> -> vector<22x110xf32>
      %214 = arith.addf %212, %213 : vector<22x110xf32>
      %215 = arith.subf %214, %1 : vector<22x110xf32>
      %216 = arith.mulf %0, %215 : vector<22x110xf32>
      %217 = arith.negf %216 : vector<22x110xf32>
      %218 = math.exp %217 : vector<22x110xf32>
      %cst_68 = arith.constant 1.000000e+00 : f32
      %219 = vector.broadcast %cst_68 : f32 to vector<22x110xf32>
      %220 = arith.addf %219, %218 : vector<22x110xf32>
      %221 = arith.divf %219, %220 : vector<22x110xf32>
      %222 = arith.mulf %11, %205 : vector<1x110xf32>
      %223 = arith.addf %30, %222 : vector<1x110xf32>
      %224 = arith.mulf %2, %221 : vector<22x110xf32>
      %cst_69 = arith.constant dense<0.000000e+00> : vector<110xf32>
      %225 = vector.multi_reduction <add>, %224, %cst_69 [0] : vector<22x110xf32> to vector<110xf32>
      %226 = vector.shape_cast %225 : vector<110xf32> to vector<1x110xf32>
      %227 = arith.addf %223, %226 : vector<1x110xf32>
      %228 = arith.mulf %3, %221 : vector<22x110xf32>
      %cst_70 = arith.constant dense<0.000000e+00> : vector<110xf32>
      %229 = vector.multi_reduction <add>, %228, %cst_70 [0] : vector<22x110xf32> to vector<110xf32>
      %230 = vector.shape_cast %229 : vector<110xf32> to vector<1x110xf32>
      %231 = arith.addf %34, %230 : vector<1x110xf32>
      %cst_71 = arith.constant 9.99999993E-9 : f32
      %232 = vector.broadcast %cst_71 : f32 to vector<1x110xf32>
      %233 = arith.addf %231, %232 : vector<1x110xf32>
      %234 = tpu.reciprocal %233 {approx = true} : vector<1x110xf32> -> vector<1x110xf32>
      %235 = arith.mulf %233, %234 : vector<1x110xf32>
      %cst_72 = arith.constant 2.000000e+00 : f32
      %236 = vector.broadcast %cst_72 : f32 to vector<1x110xf32>
      %237 = arith.subf %236, %235 : vector<1x110xf32>
      %238 = arith.mulf %234, %237 : vector<1x110xf32>
      %239 = arith.mulf %227, %238 : vector<1x110xf32>
      %240 = arith.index_cast %arg4 : i32 to index
      %c0_73 = arith.constant 0 : index
      %c0_74 = arith.constant 0 : index
      %241 = vector.load %arg3[%240, %c0_73, %c0_74] : memref<2x1x110xf32, #tpu.memory_space<vmem>>, vector<1x1x110xf32>
      %242 = vector.shape_cast %241 : vector<1x1x110xf32> to vector<1x110xf32>
      %243 = vector.shape_cast %239 : vector<1x110xf32> to vector<1x1x110xf32>
      tpu.vector_store %arg3[%240, %c0_73, %c0_74], %243 {strides = array<i32>} : memref<2x1x110xf32, #tpu.memory_space<vmem>>, vector<1x1x110xf32>,
    }
    %c2_i32_14 = arith.constant 2 : i32
    return
  }
  func.func @transform_0(%arg0: i32) -> (i32, i32, i32) {
    %c0_i32 = arith.constant 0 : i32
    %c0_i32_0 = arith.constant 0 : i32
    %c0_i32_1 = arith.constant 0 : i32
    return %arg0, %c0_i32, %c0_i32_0 : i32, i32, i32
  }
  func.func @transform_1(%arg0: i32) -> (i32, i32) {
    %c0_i32 = arith.constant 0 : i32
    %c0_i32_0 = arith.constant 0 : i32
    %c0_i32_1 = arith.constant 0 : i32
    return %c0_i32, %c0_i32_0 : i32, i32
  }
  func.func @transform_2(%arg0: i32) -> (i32, i32, i32) {
    %c0_i32 = arith.constant 0 : i32
    %c0_i32_0 = arith.constant 0 : i32
    %c0_i32_1 = arith.constant 0 : i32
    return %arg0, %c0_i32, %c0_i32_0 : i32, i32, i32
  }
}

</mosaic_0001>

<llo_original>
// kernel: tpu_custom_call.1
$region0: #{tpu_custom_call.1}
  #allocation0 [shape = 'u32[]', space=smem, size = 0x4, offset = 0x4, fixed_abs, tag = 'smem constant byte address 0x4 - core index']
  #allocation1 [shape = 'u32[144,128]{1,0:T(1,128)}', space=vmem, size = 0x12000, scoped, tag = 'internal scratch']
  %s0 = inlined_call_operand.hbm [shape: f32[2,4,110], index: 0, kind: input, shape index: {}]
  %s1 = inlined_call_operand.hbm [shape: f32[304,110], index: 1, kind: input, shape index: {}]
  %s2 = inlined_call_operand.hbm [shape: f32[2,1,110], index: 2, kind: output, shape index: {}]
  %s3 = sld [smem:[#allocation0]]
  $region33: #{tpu_custom_call.1} parent=0
    _
  %s5 = ssub.s32 1, %s3
  %s6 = scalar_select 0, %s5, %s3
  $region1: #{tpu_custom_call.1} parent=0
    #allocation2 [shape = 'u8[4096]{0}', space=vmem, size = 0x1000, scoped, tag = 'input window, operand 0, single buffered']
    #allocation3 [shape = 's32[1]{0}', space=sflag, size = 0x4, scoped, tag = 'scoped memory for tpu_custom_call.1']
    #allocation4 [shape = 's32[1]{0}', space=sflag, size = 0x4, scoped, tag = 'scoped memory for tpu_custom_call.1']
    #allocation5 [shape = 'u8[155648]{0}', space=vmem, size = 0x26000, scoped, tag = 'input window, operand 1, single buffered']
    #allocation6 [shape = 's32[1]{0}', space=sflag, size = 0x4, scoped, tag = 'scoped memory for tpu_custom_call.1']
    #allocation7 [shape = 'u8[1024]{0}', space=vmem, size = 0x400, scoped, tag = 'output window, operand 0, single buffered']
    %7 = vsyncpa [#allocation3], 0
    %8 = vsyncpa [#allocation6], 0
    %9 = vsyncpa [#allocation4], 0
    // Predicated region
    $region2: #{tpu_custom_call.1} parent=1 // pred_check
      _
    $region3: #{tpu_custom_call.1} parent=1 // pred_check_branch
      %11 = sbr.rel (0) target = $region5
    $region4: #{tpu_custom_call.1} parent=1 // pred_region
      %s13 = ssub.s32 128, 128
      %14 = vsyncadd [#allocation3], %s13
      %s15 = sshll.u32 [#allocation2], 4
      %s16 = int_to_ptr.vmem [resolvable:$true] %s15
      %21 = dma.hbm_to_vmem [thread:$0]  %s0, 128, %s16, [#allocation3], 64, 64, 4
    $region5: #{tpu_custom_call.1} parent=1 // pred_fallthru
      _
    // Predicated region
    $region6: #{tpu_custom_call.1} parent=1 // pred_check
      _
    $region7: #{tpu_custom_call.1} parent=1 // pred_check_branch
      %23 = sbr.rel (0) target = $region9
    $region8: #{tpu_custom_call.1} parent=1 // pred_region
      %s25 = ssub.s32 4864, 4864
      %26 = vsyncadd [#allocation6], %s25
      %s27 = sshll.u32 [#allocation5], 4
      %s28 = int_to_ptr.vmem [resolvable:$true] %s27
      %33 = dma.hbm_to_vmem [thread:$0]  %s1, 4864, %s28, [#allocation6], 128, 128, 8
    $region9: #{tpu_custom_call.1} parent=1 // pred_fallthru
      _
    // Predicated region
    $region10: #{tpu_custom_call.1} parent=1 // pred_check
      _
    $region11: #{tpu_custom_call.1} parent=1 // pred_check_branch
      %35 = sbr.rel (0) target = $region13
    $region12: #{tpu_custom_call.1} parent=1 // pred_region
      %36 = dma.done [#allocation3], 128
    $region13: #{tpu_custom_call.1} parent=1 // pred_fallthru
      _
    // Predicated region
    $region14: #{tpu_custom_call.1} parent=1 // pred_check
      _
    $region15: #{tpu_custom_call.1} parent=1 // pred_check_branch
      %38 = sbr.rel (0) target = $region17
    $region16: #{tpu_custom_call.1} parent=1 // pred_region
      %39 = dma.done [#allocation6], 4864
    $region17: #{tpu_custom_call.1} parent=1 // pred_fallthru
      _
    %v40 = vld [vmem:[#allocation5] sm:$0xff]
    %v41 = vld [vmem:[#allocation5 + $0x8] sm:$0xff]
    %v42 = vld [vmem:[#allocation5 + $0x10] sm:$0x3f]
    %v43 = vld [vmem:[#allocation5 + $0x18] sm:$0xff]
    %v44 = vld [vmem:[#allocation5 + $0x20] sm:$0xff]
    %v45 = vld [vmem:[#allocation5 + $0x28] sm:$0x3f]
    %v46 = vld [vmem:[#allocation5 + $0x30] sm:$0xff]
    %v47 = vld [vmem:[#allocation5 + $0x38] sm:$0xff]
    %v48 = vld [vmem:[#allocation5 + $0x40] sm:$0x3f]
    %v49 = vld [vmem:[#allocation5 + $0x48] sm:$0xff]
    %v50 = vld [vmem:[#allocation5 + $0x50] sm:$0xff]
    %v51 = vld [vmem:[#allocation5 + $0x58] sm:$0x3f]
    %v52 = vld [vmem:[#allocation5 + $0x60] sm:$0xff]
    %v53 = vld [vmem:[#allocation5 + $0x68] sm:$0xff]
    %v54 = vld [vmem:[#allocation5 + $0x70] sm:$0x3f]
    %v55 = vld [vmem:[#allocation5 + $0x78] sm:$0xf]
    %v56 = vld [vmem:[#allocation5 + $0x80] sm:$0xf]
    %v57 = vld [vmem:[#allocation5 + $0x88] sm:$0xf]
    %v58 = vld [vmem:[#allocation5 + $0x90] sm:$0xf]
    %v59 = vld [vmem:[#allocation5 + $0x98] sm:$0xf]
    %v60 = vld [vmem:[#allocation5 + $0xa0] sm:$0xf]
    %v61 = vld [vmem:[#allocation5 + $0xa8] sm:$0x1]
    %v62 = vld [vmem:[#allocation5 + $0xb0] sm:$0x1]
    %v63 = vld [vmem:[#allocation5 + $0xb8] sm:$0x1]
    loop: start=0, step=1, limit=2
    $region18: #{tpu_custom_call.1} parent=1 // loop_pre_header
      _
    $region19: #{tpu_custom_call.1} parent=1 // loop_header
      %s65 = sphi 0, %s69
      %p66 = scmp.ge.s32.totalorder %s65, 2
    $region20: #{tpu_custom_call.1} parent=1 // loop_header_branch
      %68 = sbr.rel (%p66) target = $region24
    $region21: #{tpu_custom_call.1} parent=1 // loop_body
      %s70 = smul.u32 %s65, 4
      %s71 = scalar_lea.vmem [#allocation2], %s70
      %v72 = vld [vmem:[%s71] sm:$0xf]
      %v73 = vmul.f32 %v72, %v59
      %v74 = vadd.f32 %v73, %v60
      %v75 = vsub.f32 %v74, %v56
      %v76 = vmul.f32 %v55, %v75
      %v77 = vxor.u32 %v76, 2147483648
      %v78 = vmul.f32 %v77, 1.442695
      %v79 = vpow.pop %v78
      %v80 = vadd.f32 %v79, 1.0
      %v81 = vrcp.pop %v80
      %v82 = vmul.f32 1.0, %v81
      %v83 = vmul.f32 %v57, %v82
      %vm84 = vcmask 896000
      %v85 = vsel %vm84, %v83, 0.0
      %v86 = vrot.slane %v85, 4
      %v87 = vadd.f32 %v85, %v86
      %v88 = vrot.slane %v87, 2
      %v89 = vadd.f32 %v87, %v88
      %v90 = vrot.slane %v89, 1
      %v91 = vadd.f32 %v89, %v90
      %v92 = vadd.f32 %v62, %v91
      %v93 = vmul.f32 %v58, %v82
      %v94 = vsel %vm84, %v93, 0.0
      %v95 = vrot.slane %v94, 4
      %v96 = vadd.f32 %v94, %v95
      %v97 = vrot.slane %v96, 2
      %v98 = vadd.f32 %v96, %v97
      %v99 = vrot.slane %v98, 1
      %v100 = vadd.f32 %v98, %v99
      %v101 = vadd.f32 %v63, %v100
      %v102 = vld [vmem:[#allocation5 + $0xc0] sm:$0xff]
      %v103 = vld [vmem:[#allocation5 + $0xc8] sm:$0xff]
      %v104 = vld [vmem:[#allocation5 + $0xd0] sm:$0xff]
      %v105 = vld [vmem:[#allocation5 + $0xd8] sm:$0xff]
      %v106 = vld [vmem:[#allocation5 + $0xe0] sm:$0xff]
      %v107 = vld [vmem:[#allocation5 + $0xe8] sm:$0xff]
      %v108 = vld [vmem:[#allocation5 + $0xf0] sm:$0xff]
      %v109 = vld [vmem:[#allocation5 + $0xf8] sm:$0xff]
      %v110 = vld [vmem:[#allocation5 + $0x100] sm:$0xff]
      %v111 = vld [vmem:[#allocation5 + $0x108] sm:$0xff]
      %v112 = vld [vmem:[#allocation5 + $0x110] sm:$0xff]
      %v113 = vld [vmem:[#allocation5 + $0x118] sm:$0xff]
      %v114 = vld [vmem:[#allocation5 + $0x120] sm:$0xff]
      %v115 = vld [vmem:[#allocation5 + $0x128] sm:$0x3f]
      %v116 = vmul.f32 %v52, 0.0
      %v117 = vmul.f32 %v53, 0.0
      %v118 = vmul.f32 %v54, 0.0
      %v119 = vpack.c.bf16 %v117, %v116
      %v120 = vpack.c.bf16 %v118, %v118
      %v121 = vunpack.c.l.bf16 %v119
      %v122 = vunpack.c.h.bf16 %v119
      %v123 = vunpack.c.l.bf16 %v120
      %v124 = vsub.f32 %v116, %v121
      %v125 = vsub.f32 %v117, %v122
      %v126 = vsub.f32 %v118, %v123
      %vm127 = vcmask 900096
      %v129 = vsel %vm127, %v124, 0
      %v132 = vsel %vm127, %v125, 0
      %v135 = vsel %vm127, %v126, 0
      %vm137 = vcmask 1045504
      %v139 = vsel %vm137, %v115, 0
      %141 = vmatprep.subr.mxu0 0.0
      %142 = vmatpush1.msra.mxu0 %v102
      %143 = vmatprep.subr.mxu0 0.0
      %144 = vmatpush1.msra.mxu0 %v103
      %145 = vmatprep.subr.mxu0 0.0
      %146 = vmatpush1.msra.mxu0 %v104
      %147 = vmatprep.subr.mxu0 0.0
      %148 = vmatpush1.msra.mxu0 %v105
      %149 = vmatprep.subr.mxu0 0.0
      %150 = vmatpush1.msra.mxu0 %v106
      %151 = vmatprep.subr.mxu0 0.0
      %152 = vmatpush1.msra.mxu0 %v107
      %153 = vmatprep.subr.mxu0 0.0
      %154 = vmatpush1.msra.mxu0 %v108
      %155 = vmatprep.subr.mxu0 0.0
      %156 = vmatpush1.msra.mxu0 %v109
      %157 = vmatprep.subr.mxu0 0.0
      %158 = vmatpush1.msra.mxu0 %v110
      %159 = vmatprep.subr.mxu0 0.0
      %160 = vmatpush1.msra.mxu0 %v111
      %161 = vmatprep.subr.mxu0 0.0
      %162 = vmatpush1.msra.mxu0 %v112
      %163 = vmatprep.subr.mxu0 0.0
      %164 = vmatpush1.msra.mxu0 %v113
      %165 = vmatprep.subr.mxu0 0.0
      %166 = vmatpush1.msra.mxu0 %v114
      %167 = vmatprep.subr.mxu0 0.0
      %168 = vmatpush1.msra.mxu0 %v139
      %169 = vmatprep.subr.mxu0 0.0
      %170 = vmatpush1.msra.mxu0 0.0
      %171 = vmatprep.subr.mxu0 0.0
      %172 = vmatpush1.msra.mxu0 0.0
      %173 = vmatprep.subr.mxu0 0.0
      %174 = vmatpush1.msra.mxu0 0.0
      %175 = vmatprep.subr.mxu0 0.0
      %176 = vmatpush1.msra.mxu0 0.0
      %177 = vmatprep.subr.mxu0 0.0
      %178 = vmatpush1.msra.mxu0 0.0
      %179 = vmatprep.subr.mxu0 0.0
      %180 = vmatpush1.msra.mxu0 0.0
      %181 = vmatprep.subr.mxu0 0.0
      %182 = vmatpush1.msra.mxu0 0.0
      %183 = vmatprep.subr.mxu0 0.0
      %184 = vmatpush1.msra.mxu0 0.0
      %185 = vmatprep.subr.mxu0 0.0
      %186 = vmatpush1.msra.mxu0 0.0
      %187 = vmatprep.subr.mxu0 0.0
      %188 = vmatpush1.msra.mxu0 0.0
      %189 = vmatprep.subr.mxu0 0.0
      %190 = vmatpush1.msra.mxu0 0.0
      %191 = vmatprep.subr.mxu0 0.0
      %192 = vmatpush1.msra.mxu0 0.0
      %193 = vmatprep.subr.mxu0 0.0
      %194 = vmatpush1.msra.mxu0 0.0
      %195 = vmatprep.subr.mxu0 0.0
      %196 = vmatpush1.msra.mxu0 0.0
      %197 = vmatprep.subr.mxu0 0.0
      %198 = vmatpush1.msra.mxu0 0.0
      %199 = vmatprep.subr.mxu0 0.0
      %200 = vmatpush1.msra.mxu0 0.0
      %201 = vmatprep.subr.mxu0 0.0
      %202 = vmatpush1.msra.mxu0 0.0
      %203 = vmatprep.subr.mxu0 0.0
      %204 = vmatpush1.msra.mxu0 0.0
      %205 = vmatprep.mubr.f32.mxu0 0.0
      %206 = vmatmul.mubr.f32.gmra.mrb[0].mxu0 %v129
      %v207 = vpop.f32.mrb[0].mxu0
      %v208 = vadd.f32 0.0, %v207
      %v209 = vpop.f32.mrb[0].mxu0
      %210 = vmatprep.mubr.f32.mxu0 0.0
      %211 = vmatmul.mubr.f32.gmra.mrb[0].mxu0 %v132
      %v212 = vpop.f32.mrb[0].mxu0
      %v213 = vadd.f32 0.0, %v212
      %v214 = vpop.f32.mrb[0].mxu0
      %215 = vmatprep.mubr.f32.mxu0 0.0
      %216 = vmatmul.mubr.f32.gmra.mrb[0].mxu0 %v135
      %v217 = vpop.f32.mrb[0].mxu0
      %v218 = vadd.f32 0.0, %v217
      %v219 = vpop.f32.mrb[0].mxu0
      %220 = vdwg.mxu0
      %v222 = vsel %vm127, %v121, 0
      %v225 = vsel %vm127, %v122, 0
      %v228 = vsel %vm127, %v123, 0
      %230 = vmatprep.subr.mxu0 0.0
      %231 = vmatpush1.msra.mxu0 %v102
      %232 = vmatprep.subr.mxu0 0.0
      %233 = vmatpush1.msra.mxu0 %v103
      %234 = vmatprep.subr.mxu0 0.0
      %235 = vmatpush1.msra.mxu0 %v104
      %236 = vmatprep.subr.mxu0 0.0
      %237 = vmatpush1.msra.mxu0 %v105
      %238 = vmatprep.subr.mxu0 0.0
      %239 = vmatpush1.msra.mxu0 %v106
      %240 = vmatprep.subr.mxu0 0.0
      %241 = vmatpush1.msra.mxu0 %v107
      %242 = vmatprep.subr.mxu0 0.0
      %243 = vmatpush1.msra.mxu0 %v108
      %244 = vmatprep.subr.mxu0 0.0
      %245 = vmatpush1.msra.mxu0 %v109
      %246 = vmatprep.subr.mxu0 0.0
      %247 = vmatpush1.msra.mxu0 %v110
      %248 = vmatprep.subr.mxu0 0.0
      %249 = vmatpush1.msra.mxu0 %v111
      %250 = vmatprep.subr.mxu0 0.0
      %251 = vmatpush1.msra.mxu0 %v112
      %252 = vmatprep.subr.mxu0 0.0
      %253 = vmatpush1.msra.mxu0 %v113
      %254 = vmatprep.subr.mxu0 0.0
      %255 = vmatpush1.msra.mxu0 %v114
      %256 = vmatprep.subr.mxu0 0.0
      %257 = vmatpush1.msra.mxu0 %v139
      %258 = vmatprep.subr.mxu0 0.0
      %259 = vmatpush1.msra.mxu0 0.0
      %260 = vmatprep.subr.mxu0 0.0
      %261 = vmatpush1.msra.mxu0 0.0
      %262 = vmatprep.subr.mxu0 0.0
      %263 = vmatpush1.msra.mxu0 0.0
      %264 = vmatprep.subr.mxu0 0.0
      %265 = vmatpush1.msra.mxu0 0.0
      %266 = vmatprep.subr.mxu0 0.0
      %267 = vmatpush1.msra.mxu0 0.0
      %268 = vmatprep.subr.mxu0 0.0
      %269 = vmatpush1.msra.mxu0 0.0
      %270 = vmatprep.subr.mxu0 0.0
      %271 = vmatpush1.msra.mxu0 0.0
      %272 = vmatprep.subr.mxu0 0.0
      %273 = vmatpush1.msra.mxu0 0.0
      %274 = vmatprep.subr.mxu0 0.0
      %275 = vmatpush1.msra.mxu0 0.0
      %276 = vmatprep.subr.mxu0 0.0
      %277 = vmatpush1.msra.mxu0 0.0
      %278 = vmatprep.subr.mxu0 0.0
      %279 = vmatpush1.msra.mxu0 0.0
      %280 = vmatprep.subr.mxu0 0.0
      %281 = vmatpush1.msra.mxu0 0.0
      %282 = vmatprep.subr.mxu0 0.0
      %283 = vmatpush1.msra.mxu0 0.0
      %284 = vmatprep.subr.mxu0 0.0
      %285 = vmatpush1.msra.mxu0 0.0
      %286 = vmatprep.subr.mxu0 0.0
      %287 = vmatpush1.msra.mxu0 0.0
      %288 = vmatprep.subr.mxu0 0.0
      %289 = vmatpush1.msra.mxu0 0.0
      %290 = vmatprep.subr.mxu0 0.0
      %291 = vmatpush1.msra.mxu0 0.0
      %292 = vmatprep.subr.mxu0 0.0
      %293 = vmatpush1.msra.mxu0 0.0
      %294 = vmatprep.mubr.f32.mxu0 0.0
      %295 = vmatmul.mubr.f32.gmra.mrb[0].mxu0 %v222
      %v296 = vpop.f32.mrb[0].mxu0
      %v297 = vadd.f32 %v208, %v296
      %v298 = vpop.f32.mrb[0].mxu0
      %299 = vmatprep.mubr.f32.mxu0 0.0
      %300 = vmatmul.mubr.f32.gmra.mrb[0].mxu0 %v225
      %v301 = vpop.f32.mrb[0].mxu0
      %v302 = vadd.f32 %v213, %v301
      %v303 = vpop.f32.mrb[0].mxu0
      %304 = vmatprep.mubr.f32.mxu0 0.0
      %305 = vmatmul.mubr.f32.gmra.mrb[0].mxu0 %v228
      %v306 = vpop.f32.mrb[0].mxu0
      %v307 = vadd.f32 %v218, %v306
      %v308 = vpop.f32.mrb[0].mxu0
      %309 = vdwg.mxu0
      %v310 = vsub.f32 %v297, %v43
      %v311 = vsub.f32 %v302, %v44
      %v312 = vsub.f32 %v307, %v45
      %v313 = vmul.f32 %v40, %v310
      %v314 = vmul.f32 %v41, %v311
      %v315 = vmul.f32 %v42, %v312
      %v316 = vxor.u32 %v313, 2147483648
      %v317 = vxor.u32 %v314, 2147483648
      %v318 = vxor.u32 %v315, 2147483648
      %v319 = vmul.f32 %v316, 1.442695
      %v320 = vpow.pop %v319
      %v321 = vmul.f32 %v317, 1.442695
      %v322 = vpow.pop %v321
      %v323 = vmul.f32 %v318, 1.442695
      %v324 = vpow.pop %v323
      %v325 = vadd.f32 %v320, 1.0
      %v326 = vadd.f32 %v322, 1.0
      %v327 = vadd.f32 %v324, 1.0
      %v328 = vrcp.pop %v325
      %v329 = vmul.f32 1.0, %v328
      %v330 = vrcp.pop %v326
      %v331 = vmul.f32 1.0, %v330
      %v332 = vrcp.pop %v327
      %v333 = vmul.f32 1.0, %v332
      %v334 = vmul.f32 %v61, 0.0
      %v335 = vadd.f32 %v92, %v334
      %v336 = vmul.f32 %v46, %v329
      %v337 = vmul.f32 %v47, %v331
      %v338 = vmul.f32 %v48, %v333
      %v339 = vsel %vm127, %v336, 0.0
      %v340 = vsel %vm127, %v337, 0.0
      %v341 = vadd.f32 %v339, %v340
      %vm342 = vcmask 898048
      %v343 = vsel %vm342, %v338, 0.0
      %v344 = vadd.f32 %v341, %v343
      %v345 = vrot.slane %v344, 4
      %v346 = vadd.f32 %v344, %v345
      %v347 = vrot.slane %v346, 2
      %v348 = vadd.f32 %v346, %v347
      %v349 = vrot.slane %v348, 1
      %v350 = vadd.f32 %v348, %v349
      %v351 = vadd.f32 %v335, %v350
      %v352 = vmul.f32 %v49, %v329
      %v353 = vmul.f32 %v50, %v331
      %v354 = vmul.f32 %v51, %v333
      %v355 = vsel %vm127, %v352, 0.0
      %v356 = vsel %vm127, %v353, 0.0
      %v357 = vadd.f32 %v355, %v356
      %v358 = vsel %vm342, %v354, 0.0
      %v359 = vadd.f32 %v357, %v358
      %v360 = vrot.slane %v359, 4
      %v361 = vadd.f32 %v359, %v360
      %v362 = vrot.slane %v361, 2
      %v363 = vadd.f32 %v361, %v362
      %v364 = vrot.slane %v363, 1
      %v365 = vadd.f32 %v363, %v364
      %v366 = vadd.f32 %v101, %v365
      %v367 = vadd.f32 %v366, 1e-08
      %v368 = vrcp.pop %v367
      %v369 = vmul.f32 %v367, %v368
      %v370 = vsub.f32 2.0, %v369
      %v371 = vmul.f32 %v368, %v370
      %v372 = vmul.f32 %v351, %v371
      %v373 = vlaneseq
      %v374 = vshrl.u32 %v373, 7
      %v375 = vsub.s32 0, %v374
      %v376 = vrot.slane %v372, %v375
      %v377 = vmul.f32 %v376, %v52
      %v378 = vmul.f32 %v376, %v53
      %v379 = vmul.f32 %v376, %v54
      %v380 = vpack.c.bf16 %v378, %v377
      %v381 = vpack.c.bf16 %v379, %v379
      %v382 = vunpack.c.l.bf16 %v380
      %v383 = vunpack.c.h.bf16 %v380
      %v384 = vunpack.c.l.bf16 %v381
      %v385 = vsub.f32 %v377, %v382
      %v386 = vsub.f32 %v378, %v383
      %v387 = vsub.f32 %v379, %v384
      %v389 = vsel %vm127, %v385, 0
      %v392 = vsel %vm127, %v386, 0
      %v395 = vsel %vm127, %v387, 0
      %397 = vmatprep.subr.mxu0 0.0
      %398 = vmatpush1.msra.mxu0 %v102
      %399 = vmatprep.subr.mxu0 0.0
      %400 = vmatpush1.msra.mxu0 %v103
      %401 = vmatprep.subr.mxu0 0.0
      %402 = vmatpush1.msra.mxu0 %v104
      %403 = vmatprep.subr.mxu0 0.0
      %404 = vmatpush1.msra.mxu0 %v105
      %405 = vmatprep.subr.mxu0 0.0
      %406 = vmatpush1.msra.mxu0 %v106
      %407 = vmatprep.subr.mxu0 0.0
      %408 = vmatpush1.msra.mxu0 %v107
      %409 = vmatprep.subr.mxu0 0.0
      %410 = vmatpush1.msra.mxu0 %v108
      %411 = vmatprep.subr.mxu0 0.0
      %412 = vmatpush1.msra.mxu0 %v109
      %413 = vmatprep.subr.mxu0 0.0
      %414 = vmatpush1.msra.mxu0 %v110
      %415 = vmatprep.subr.mxu0 0.0
      %416 = vmatpush1.msra.mxu0 %v111
      %417 = vmatprep.subr.mxu0 0.0
      %418 = vmatpush1.msra.mxu0 %v112
      %419 = vmatprep.subr.mxu0 0.0
      %420 = vmatpush1.msra.mxu0 %v113
      %421 = vmatprep.subr.mxu0 0.0
      %422 = vmatpush1.msra.mxu0 %v114
      %423 = vmatprep.subr.mxu0 0.0
      %424 = vmatpush1.msra.mxu0 %v139
      %425 = vmatprep.subr.mxu0 0.0
      %426 = vmatpush1.msra.mxu0 0.0
      %427 = vmatprep.subr.mxu0 0.0
      %428 = vmatpush1.msra.mxu0 0.0
      %429 = vmatprep.subr.mxu0 0.0
      %430 = vmatpush1.msra.mxu0 0.0
      %431 = vmatprep.subr.mxu0 0.0
      %432 = vmatpush1.msra.mxu0 0.0
      %433 = vmatprep.subr.mxu0 0.0
      %434 = vmatpush1.msra.mxu0 0.0
      %435 = vmatprep.subr.mxu0 0.0
      %436 = vmatpush1.msra.mxu0 0.0
      %437 = vmatprep.subr.mxu0 0.0
      %438 = vmatpush1.msra.mxu0 0.0
      %439 = vmatprep.subr.mxu0 0.0
      %440 = vmatpush1.msra.mxu0 0.0
      %441 = vmatprep.subr.mxu0 0.0
      %442 = vmatpush1.msra.mxu0 0.0
      %443 = vmatprep.subr.mxu0 0.0
      %444 = vmatpush1.msra.mxu0 0.0
      %445 = vmatprep.subr.mxu0 0.0
      %446 = vmatpush1.msra.mxu0 0.0
      %447 = vmatprep.subr.mxu0 0.0
      %448 = vmatpush1.msra.mxu0 0.0
      %449 = vmatprep.subr.mxu0 0.0
      %450 = vmatpush1.msra.mxu0 0.0
      %451 = vmatprep.subr.mxu0 0.0
      %452 = vmatpush1.msra.mxu0 0.0
      %453 = vmatprep.subr.mxu0 0.0
      %454 = vmatpush1.msra.mxu0 0.0
      %455 = vmatprep.subr.mxu0 0.0
      %456 = vmatpush1.msra.mxu0 0.0
      %457 = vmatprep.subr.mxu0 0.0
      %458 = vmatpush1.msra.mxu0 0.0
      %459 = vmatprep.subr.mxu0 0.0
      %460 = vmatpush1.msra.mxu0 0.0
      %461 = vmatprep.mubr.f32.mxu0 0.0
      %462 = vmatmul.mubr.f32.gmra.mrb[0].mxu0 %v389
      %v463 = vpop.f32.mrb[0].mxu0
      %v464 = vadd.f32 0.0, %v463
      %v465 = vpop.f32.mrb[0].mxu0
      %466 = vmatprep.mubr.f32.mxu0 0.0
      %467 = vmatmul.mubr.f32.gmra.mrb[0].mxu0 %v392
      %v468 = vpop.f32.mrb[0].mxu0
      %v469 = vadd.f32 0.0, %v468
      %v470 = vpop.f32.mrb[0].mxu0
      %471 = vmatprep.mubr.f32.mxu0 0.0
      %472 = vmatmul.mubr.f32.gmra.mrb[0].mxu0 %v395
      %v473 = vpop.f32.mrb[0].mxu0
      %v474 = vadd.f32 0.0, %v473
      %v475 = vpop.f32.mrb[0].mxu0
      %476 = vdwg.mxu0
      %v478 = vsel %vm127, %v382, 0
      %v481 = vsel %vm127, %v383, 0
      %v484 = vsel %vm127, %v384, 0
      %486 = vmatprep.subr.mxu0 0.0
      %487 = vmatpush1.msra.mxu0 %v102
      %488 = vmatprep.subr.mxu0 0.0
      %489 = vmatpush1.msra.mxu0 %v103
      %490 = vmatprep.subr.mxu0 0.0
      %491 = vmatpush1.msra.mxu0 %v104
      %492 = vmatprep.subr.mxu0 0.0
      %493 = vmatpush1.msra.mxu0 %v105
      %494 = vmatprep.subr.mxu0 0.0
      %495 = vmatpush1.msra.mxu0 %v106
      %496 = vmatprep.subr.mxu0 0.0
      %497 = vmatpush1.msra.mxu0 %v107
      %498 = vmatprep.subr.mxu0 0.0
      %499 = vmatpush1.msra.mxu0 %v108
      %500 = vmatprep.subr.mxu0 0.0
      %501 = vmatpush1.msra.mxu0 %v109
      %502 = vmatprep.subr.mxu0 0.0
      %503 = vmatpush1.msra.mxu0 %v110
      %504 = vmatprep.subr.mxu0 0.0
      %505 = vmatpush1.msra.mxu0 %v111
      %506 = vmatprep.subr.mxu0 0.0
      %507 = vmatpush1.msra.mxu0 %v112
      %508 = vmatprep.subr.mxu0 0.0
      %509 = vmatpush1.msra.mxu0 %v113
      %510 = vmatprep.subr.mxu0 0.0
      %511 = vmatpush1.msra.mxu0 %v114
      %512 = vmatprep.subr.mxu0 0.0
      %513 = vmatpush1.msra.mxu0 %v139
      %514 = vmatprep.subr.mxu0 0.0
      %515 = vmatpush1.msra.mxu0 0.0
      %516 = vmatprep.subr.mxu0 0.0
      %517 = vmatpush1.msra.mxu0 0.0
      %518 = vmatprep.subr.mxu0 0.0
      %519 = vmatpush1.msra.mxu0 0.0
      %520 = vmatprep.subr.mxu0 0.0
      %521 = vmatpush1.msra.mxu0 0.0
      %522 = vmatprep.subr.mxu0 0.0
      %523 = vmatpush1.msra.mxu0 0.0
      %524 = vmatprep.subr.mxu0 0.0
      %525 = vmatpush1.msra.mxu0 0.0
      %526 = vmatprep.subr.mxu0 0.0
      %527 = vmatpush1.msra.mxu0 0.0
      %528 = vmatprep.subr.mxu0 0.0
      %529 = vmatpush1.msra.mxu0 0.0
      %530 = vmatprep.subr.mxu0 0.0
      %531 = vmatpush1.msra.mxu0 0.0
      %532 = vmatprep.subr.mxu0 0.0
      %533 = vmatpush1.msra.mxu0 0.0
      %534 = vmatprep.subr.mxu0 0.0
      %535 = vmatpush1.msra.mxu0 0.0
      %536 = vmatprep.subr.mxu0 0.0
      %537 = vmatpush1.msra.mxu0 0.0
      %538 = vmatprep.subr.mxu0 0.0
      %539 = vmatpush1.msra.mxu0 0.0
      %540 = vmatprep.subr.mxu0 0.0
      %541 = vmatpush1.msra.mxu0 0.0
      %542 = vmatprep.subr.mxu0 0.0
      %543 = vmatpush1.msra.mxu0 0.0
      %544 = vmatprep.subr.mxu0 0.0
      %545 = vmatpush1.msra.mxu0 0.0
      %546 = vmatprep.subr.mxu0 0.0
      %547 = vmatpush1.msra.mxu0 0.0
      %548 = vmatprep.subr.mxu0 0.0
      %549 = vmatpush1.msra.mxu0 0.0
      %550 = vmatprep.mubr.f32.mxu0 0.0
      %551 = vmatmul.mubr.f32.gmra.mrb[0].mxu0 %v478
      %v552 = vpop.f32.mrb[0].mxu0
      %v553 = vadd.f32 %v464, %v552
      %v554 = vpop.f32.mrb[0].mxu0
      %555 = vmatprep.mubr.f32.mxu0 0.0
      %556 = vmatmul.mubr.f32.gmra.mrb[0].mxu0 %v481
      %v557 = vpop.f32.mrb[0].mxu0
      %v558 = vadd.f32 %v469, %v557
      %v559 = vpop.f32.mrb[0].mxu0
      %560 = vmatprep.mubr.f32.mxu0 0.0
      %561 = vmatmul.mubr.f32.gmra.mrb[0].mxu0 %v484
      %v562 = vpop.f32.mrb[0].mxu0
      %v563 = vadd.f32 %v474, %v562
      %v564 = vpop.f32.mrb[0].mxu0
      %565 = vdwg.mxu0
      %v566 = vsub.f32 %v553, %v43
      %v567 = vsub.f32 %v558, %v44
      %v568 = vsub.f32 %v563, %v45
      %v569 = vmul.f32 %v40, %v566
      %v570 = vmul.f32 %v41, %v567
      %v571 = vmul.f32 %v42, %v568
      %v572 = vxor.u32 %v569, 2147483648
      %v573 = vxor.u32 %v570, 2147483648
      %v574 = vxor.u32 %v571, 2147483648
      %v575 = vmul.f32 %v572, 1.442695
      %v576 = vpow.pop %v575
      %v577 = vmul.f32 %v573, 1.442695
      %v578 = vpow.pop %v577
      %v579 = vmul.f32 %v574, 1.442695
      %v580 = vpow.pop %v579
      %v581 = vadd.f32 %v576, 1.0
      %v582 = vadd.f32 %v578, 1.0
      %v583 = vadd.f32 %v580, 1.0
      %v584 = vrcp.pop %v581
      %v585 = vmul.f32 1.0, %v584
      %v586 = vrcp.pop %v582
      %v587 = vmul.f32 1.0, %v586
      %v588 = vrcp.pop %v583
      %v589 = vmul.f32 1.0, %v588
      %v590 = vmul.f32 %v61, %v372
      %v591 = vadd.f32 %v92, %v590
      %v592 = vmul.f32 %v46, %v585
      %v593 = vmul.f32 %v47, %v587
      %v594 = vmul.f32 %v48, %v589
      %v595 = vsel %vm127, %v592, 0.0
      %v596 = vsel %vm127, %v593, 0.0
      %v597 = vadd.f32 %v595, %v596
      %v598 = vsel %vm342, %v594, 0.0
      %v599 = vadd.f32 %v597, %v598
      %v600 = vrot.slane %v599, 4
      %v601 = vadd.f32 %v599, %v600
      %v602 = vrot.slane %v601, 2
      %v603 = vadd.f32 %v601, %v602
      %v604 = vrot.slane %v603, 1
      %v605 = vadd.f32 %v603, %v604
      %v606 = vadd.f32 %v591, %v605
      %v607 = vmul.f32 %v49, %v585
      %v608 = vmul.f32 %v50, %v587
      %v609 = vmul.f32 %v51, %v589
      %v610 = vsel %vm127, %v607, 0.0
      %v611 = vsel %vm127, %v608, 0.0
      %v612 = vadd.f32 %v610, %v611
      %v613 = vsel %vm342, %v609, 0.0
      %v614 = vadd.f32 %v612, %v613
      %v615 = vrot.slane %v614, 4
      %v616 = vadd.f32 %v614, %v615
      %v617 = vrot.slane %v616, 2
      %v618 = vadd.f32 %v616, %v617
      %v619 = vrot.slane %v618, 1
      %v620 = vadd.f32 %v618, %v619
      %v621 = vadd.f32 %v101, %v620
      %v622 = vadd.f32 %v621, 1e-08
      %v623 = vrcp.pop %v622
      %v624 = vmul.f32 %v622, %v623
      %v625 = vsub.f32 2.0, %v624
      %v626 = vmul.f32 %v623, %v625
      %v627 = vmul.f32 %v606, %v626
      %v628 = vlaneseq
      %v629 = vshrl.u32 %v628, 7
      %v630 = vsub.s32 0, %v629
      %v631 = vrot.slane %v627, %v630
      %v632 = vmul.f32 %v631, %v52
      %v633 = vmul.f32 %v631, %v53
      %v634 = vmul.f32 %v631, %v54
      %v635 = vpack.c.bf16 %v633, %v632
      %v636 = vpack.c.bf16 %v634, %v634
      %v637 = vunpack.c.l.bf16 %v635
      %v638 = vunpack.c.h.bf16 %v635
      %v639 = vunpack.c.l.bf16 %v636
      %v640 = vsub.f32 %v632, %v637
      %v641 = vsub.f32 %v633, %v638
      %v642 = vsub.f32 %v634, %v639
      %v644 = vsel %vm127, %v640, 0
      %v647 = vsel %vm127, %v641, 0
      %v650 = vsel %vm127, %v642, 0
      %652 = vmatprep.subr.mxu0 0.0
      %653 = vmatpush1.msra.mxu0 %v102
      %654 = vmatprep.subr.mxu0 0.0
      %655 = vmatpush1.msra.mxu0 %v103
      %656 = vmatprep.subr.mxu0 0.0
      %657 = vmatpush1.msra.mxu0 %v104
      %658 = vmatprep.subr.mxu0 0.0
      %659 = vmatpush1.msra.mxu0 %v105
      %660 = vmatprep.subr.mxu0 0.0
      %661 = vmatpush1.msra.mxu0 %v106
      %662 = vmatprep.subr.mxu0 0.0
      %663 = vmatpush1.msra.mxu0 %v107
      %664 = vmatprep.subr.mxu0 0.0
      %665 = vmatpush1.msra.mxu0 %v108
      %666 = vmatprep.subr.mxu0 0.0
      %667 = vmatpush1.msra.mxu0 %v109
      %668 = vmatprep.subr.mxu0 0.0
      %669 = vmatpush1.msra.mxu0 %v110
      %670 = vmatprep.subr.mxu0 0.0
      %671 = vmatpush1.msra.mxu0 %v111
      %672 = vmatprep.subr.mxu0 0.0
      %673 = vmatpush1.msra.mxu0 %v112
      %674 = vmatprep.subr.mxu0 0.0
      %675 = vmatpush1.msra.mxu0 %v113
      %676 = vmatprep.subr.mxu0 0.0
      %677 = vmatpush1.msra.mxu0 %v114
      %678 = vmatprep.subr.mxu0 0.0
      %679 = vmatpush1.msra.mxu0 %v139
      %680 = vmatprep.subr.mxu0 0.0
      %681 = vmatpush1.msra.mxu0 0.0
      %682 = vmatprep.subr.mxu0 0.0
      %683 = vmatpush1.msra.mxu0 0.0
      %684 = vmatprep.subr.mxu0 0.0
      %685 = vmatpush1.msra.mxu0 0.0
      %686 = vmatprep.subr.mxu0 0.0
      %687 = vmatpush1.msra.mxu0 0.0
      %688 = vmatprep.subr.mxu0 0.0
      %689 = vmatpush1.msra.mxu0 0.0
      %690 = vmatprep.subr.mxu0 0.0
      %691 = vmatpush1.msra.mxu0 0.0
      %692 = vmatprep.subr.mxu0 0.0
      %693 = vmatpush1.msra.mxu0 0.0
      %694 = vmatprep.subr.mxu0 0.0
      %695 = vmatpush1.msra.mxu0 0.0
      %696 = vmatprep.subr.mxu0 0.0
      %697 = vmatpush1.msra.mxu0 0.0
      %698 = vmatprep.subr.mxu0 0.0
      %699 = vmatpush1.msra.mxu0 0.0
      %700 = vmatprep.subr.mxu0 0.0
      %701 = vmatpush1.msra.mxu0 0.0
      %702 = vmatprep.subr.mxu0 0.0
      %703 = vmatpush1.msra.mxu0 0.0
      %704 = vmatprep.subr.mxu0 0.0
      %705 = vmatpush1.msra.mxu0 0.0
      %706 = vmatprep.subr.mxu0 0.0
      %707 = vmatpush1.msra.mxu0 0.0
      %708 = vmatprep.subr.mxu0 0.0
      %709 = vmatpush1.msra.mxu0 0.0
      %710 = vmatprep.subr.mxu0 0.0
      %711 = vmatpush1.msra.mxu0 0.0
      %712 = vmatprep.subr.mxu0 0.0
      %713 = vmatpush1.msra.mxu0 0.0
      %714 = vmatprep.subr.mxu0 0.0
      %715 = vmatpush1.msra.mxu0 0.0
      %716 = vmatprep.mubr.f32.mxu0 0.0
      %717 = vmatmul.mubr.f32.gmra.mrb[0].mxu0 %v644
      %v718 = vpop.f32.mrb[0].mxu0
      %v719 = vadd.f32 0.0, %v718
      %v720 = vpop.f32.mrb[0].mxu0
      %721 = vmatprep.mubr.f32.mxu0 0.0
      %722 = vmatmul.mubr.f32.gmra.mrb[0].mxu0 %v647
      %v723 = vpop.f32.mrb[0].mxu0
      %v724 = vadd.f32 0.0, %v723
      %v725 = vpop.f32.mrb[0].mxu0
      %726 = vmatprep.mubr.f32.mxu0 0.0
      %727 = vmatmul.mubr.f32.gmra.mrb[0].mxu0 %v650
      %v728 = vpop.f32.mrb[0].mxu0
      %v729 = vadd.f32 0.0, %v728
      %v730 = vpop.f32.mrb[0].mxu0
      %731 = vdwg.mxu0
      %v733 = vsel %vm127, %v637, 0
      %v736 = vsel %vm127, %v638, 0
      %v739 = vsel %vm127, %v639, 0
      %741 = vmatprep.subr.mxu0 0.0
      %742 = vmatpush1.msra.mxu0 %v102
      %743 = vmatprep.subr.mxu0 0.0
      %744 = vmatpush1.msra.mxu0 %v103
      %745 = vmatprep.subr.mxu0 0.0
      %746 = vmatpush1.msra.mxu0 %v104
      %747 = vmatprep.subr.mxu0 0.0
      %748 = vmatpush1.msra.mxu0 %v105
      %749 = vmatprep.subr.mxu0 0.0
      %750 = vmatpush1.msra.mxu0 %v106
      %751 = vmatprep.subr.mxu0 0.0
      %752 = vmatpush1.msra.mxu0 %v107
      %753 = vmatprep.subr.mxu0 0.0
      %754 = vmatpush1.msra.mxu0 %v108
      %755 = vmatprep.subr.mxu0 0.0
      %756 = vmatpush1.msra.mxu0 %v109
      %757 = vmatprep.subr.mxu0 0.0
      %758 = vmatpush1.msra.mxu0 %v110
      %759 = vmatprep.subr.mxu0 0.0
      %760 = vmatpush1.msra.mxu0 %v111
      %761 = vmatprep.subr.mxu0 0.0
      %762 = vmatpush1.msra.mxu0 %v112
      %763 = vmatprep.subr.mxu0 0.0
      %764 = vmatpush1.msra.mxu0 %v113
      %765 = vmatprep.subr.mxu0 0.0
      %766 = vmatpush1.msra.mxu0 %v114
      %767 = vmatprep.subr.mxu0 0.0
      %768 = vmatpush1.msra.mxu0 %v139
      %769 = vmatprep.subr.mxu0 0.0
      %770 = vmatpush1.msra.mxu0 0.0
      %771 = vmatprep.subr.mxu0 0.0
      %772 = vmatpush1.msra.mxu0 0.0
      %773 = vmatprep.subr.mxu0 0.0
      %774 = vmatpush1.msra.mxu0 0.0
      %775 = vmatprep.subr.mxu0 0.0
      %776 = vmatpush1.msra.mxu0 0.0
      %777 = vmatprep.subr.mxu0 0.0
      %778 = vmatpush1.msra.mxu0 0.0
      %779 = vmatprep.subr.mxu0 0.0
      %780 = vmatpush1.msra.mxu0 0.0
      %781 = vmatprep.subr.mxu0 0.0
      %782 = vmatpush1.msra.mxu0 0.0
      %783 = vmatprep.subr.mxu0 0.0
      %784 = vmatpush1.msra.mxu0 0.0
      %785 = vmatprep.subr.mxu0 0.0
      %786 = vmatpush1.msra.mxu0 0.0
      %787 = vmatprep.subr.mxu0 0.0
      %788 = vmatpush1.msra.mxu0 0.0
      %789 = vmatprep.subr.mxu0 0.0
      %790 = vmatpush1.msra.mxu0 0.0
      %791 = vmatprep.subr.mxu0 0.0
      %792 = vmatpush1.msra.mxu0 0.0
      %793 = vmatprep.subr.mxu0 0.0
      %794 = vmatpush1.msra.mxu0 0.0
      %795 = vmatprep.subr.mxu0 0.0
      %796 = vmatpush1.msra.mxu0 0.0
      %797 = vmatprep.subr.mxu0 0.0
      %798 = vmatpush1.msra.mxu0 0.0
      %799 = vmatprep.subr.mxu0 0.0
      %800 = vmatpush1.msra.mxu0 0.0
      %801 = vmatprep.subr.mxu0 0.0
      %802 = vmatpush1.msra.mxu0 0.0
      %803 = vmatprep.subr.mxu0 0.0
      %804 = vmatpush1.msra.mxu0 0.0
      %805 = vmatprep.mubr.f32.mxu0 0.0
      %806 = vmatmul.mubr.f32.gmra.mrb[0].mxu0 %v733
      %v807 = vpop.f32.mrb[0].mxu0
      %v808 = vadd.f32 %v719, %v807
      %v809 = vpop.f32.mrb[0].mxu0
      %810 = vmatprep.mubr.f32.mxu0 0.0
      %811 = vmatmul.mubr.f32.gmra.mrb[0].mxu0 %v736
      %v812 = vpop.f32.mrb[0].mxu0
      %v813 = vadd.f32 %v724, %v812
      %v814 = vpop.f32.mrb[0].mxu0
      %815 = vmatprep.mubr.f32.mxu0 0.0
      %816 = vmatmul.mubr.f32.gmra.mrb[0].mxu0 %v739
      %v817 = vpop.f32.mrb[0].mxu0
      %v818 = vadd.f32 %v729, %v817
      %v819 = vpop.f32.mrb[0].mxu0
      %820 = vdwg.mxu0
      %v821 = vsub.f32 %v808, %v43
      %v822 = vsub.f32 %v813, %v44
      %v823 = vsub.f32 %v818, %v45
      %v824 = vmul.f32 %v40, %v821
      %v825 = vmul.f32 %v41, %v822
      %v826 = vmul.f32 %v42, %v823
      %v827 = vxor.u32 %v824, 2147483648
      %v828 = vxor.u32 %v825, 2147483648
      %v829 = vxor.u32 %v826, 2147483648
      %v830 = vmul.f32 %v827, 1.442695
      %v831 = vpow.pop %v830
      %v832 = vmul.f32 %v828, 1.442695
      %v833 = vpow.pop %v832
      %v834 = vmul.f32 %v829, 1.442695
      %v835 = vpow.pop %v834
      %v836 = vadd.f32 %v831, 1.0
      %v837 = vadd.f32 %v833, 1.0
      %v838 = vadd.f32 %v835, 1.0
      %v839 = vrcp.pop %v836
      %v840 = vmul.f32 1.0, %v839
      %v841 = vrcp.pop %v837
      %v842 = vmul.f32 1.0, %v841
      %v843 = vrcp.pop %v838
      %v844 = vmul.f32 1.0, %v843
      %v845 = vmul.f32 %v61, %v627
      %v846 = vadd.f32 %v92, %v845
      %v847 = vmul.f32 %v46, %v840
      %v848 = vmul.f32 %v47, %v842
      %v849 = vmul.f32 %v48, %v844
      %v850 = vsel %vm127, %v847, 0.0
      %v851 = vsel %vm127, %v848, 0.0
      %v852 = vadd.f32 %v850, %v851
      %v853 = vsel %vm342, %v849, 0.0
      %v854 = vadd.f32 %v852, %v853
      %v855 = vrot.slane %v854, 4
      %v856 = vadd.f32 %v854, %v855
      %v857 = vrot.slane %v856, 2
      %v858 = vadd.f32 %v856, %v857
      %v859 = vrot.slane %v858, 1
      %v860 = vadd.f32 %v858, %v859
      %v861 = vadd.f32 %v846, %v860
      %v862 = vmul.f32 %v49, %v840
      %v863 = vmul.f32 %v50, %v842
      %v864 = vmul.f32 %v51, %v844
      %v865 = vsel %vm127, %v862, 0.0
      %v866 = vsel %vm127, %v863, 0.0
      %v867 = vadd.f32 %v865, %v866
      %v868 = vsel %vm342, %v864, 0.0
      %v869 = vadd.f32 %v867, %v868
      %v870 = vrot.slane %v869, 4
      %v871 = vadd.f32 %v869, %v870
      %v872 = vrot.slane %v871, 2
      %v873 = vadd.f32 %v871, %v872
      %v874 = vrot.slane %v873, 1
      %v875 = vadd.f32 %v873, %v874
      %v876 = vadd.f32 %v101, %v875
      %v877 = vadd.f32 %v876, 1e-08
      %v878 = vrcp.pop %v877
      %v879 = vmul.f32 %v877, %v878
      %v880 = vsub.f32 2.0, %v879
      %v881 = vmul.f32 %v878, %v880
      %v882 = vmul.f32 %v861, %v881
      %v883 = vlaneseq
      %v884 = vshrl.u32 %v883, 7
      %v885 = vsub.s32 0, %v884
      %v886 = vrot.slane %v882, %v885
      %v887 = vmul.f32 %v886, %v52
      %v888 = vmul.f32 %v886, %v53
      %v889 = vmul.f32 %v886, %v54
      %v890 = vpack.c.bf16 %v888, %v887
      %v891 = vpack.c.bf16 %v889, %v889
      %v892 = vunpack.c.l.bf16 %v890
      %v893 = vunpack.c.h.bf16 %v890
      %v894 = vunpack.c.l.bf16 %v891
      %v895 = vsub.f32 %v887, %v892
      %v896 = vsub.f32 %v888, %v893
      %v897 = vsub.f32 %v889, %v894
      %v899 = vsel %vm127, %v895, 0
      %v902 = vsel %vm127, %v896, 0
      %v905 = vsel %vm127, %v897, 0
      %907 = vmatprep.subr.mxu0 0.0
      %908 = vmatpush1.msra.mxu0 %v102
      %909 = vmatprep.subr.mxu0 0.0
      %910 = vmatpush1.msra.mxu0 %v103
      %911 = vmatprep.subr.mxu0 0.0
      %912 = vmatpush1.msra.mxu0 %v104
      %913 = vmatprep.subr.mxu0 0.0
      %914 = vmatpush1.msra.mxu0 %v105
      %915 = vmatprep.subr.mxu0 0.0
      %916 = vmatpush1.msra.mxu0 %v106
      %917 = vmatprep.subr.mxu0 0.0
      %918 = vmatpush1.msra.mxu0 %v107
      %919 = vmatprep.subr.mxu0 0.0
      %920 = vmatpush1.msra.mxu0 %v108
      %921 = vmatprep.subr.mxu0 0.0
      %922 = vmatpush1.msra.mxu0 %v109
      %923 = vmatprep.subr.mxu0 0.0
      %924 = vmatpush1.msra.mxu0 %v110
      %925 = vmatprep.subr.mxu0 0.0
      %926 = vmatpush1.msra.mxu0 %v111
      %927 = vmatprep.subr.mxu0 0.0
      %928 = vmatpush1.msra.mxu0 %v112
      %929 = vmatprep.subr.mxu0 0.0
      %930 = vmatpush1.msra.mxu0 %v113
      %931 = vmatprep.subr.mxu0 0.0
      %932 = vmatpush1.msra.mxu0 %v114
      %933 = vmatprep.subr.mxu0 0.0
      %934 = vmatpush1.msra.mxu0 %v139
      %935 = vmatprep.subr.mxu0 0.0
      %936 = vmatpush1.msra.mxu0 0.0
      %937 = vmatprep.subr.mxu0 0.0
      %938 = vmatpush1.msra.mxu0 0.0
      %939 = vmatprep.subr.mxu0 0.0
      %940 = vmatpush1.msra.mxu0 0.0
      %941 = vmatprep.subr.mxu0 0.0
      %942 = vmatpush1.msra.mxu0 0.0
      %943 = vmatprep.subr.mxu0 0.0
      %944 = vmatpush1.msra.mxu0 0.0
      %945 = vmatprep.subr.mxu0 0.0
      %946 = vmatpush1.msra.mxu0 0.0
      %947 = vmatprep.subr.mxu0 0.0
      %948 = vmatpush1.msra.mxu0 0.0
      %949 = vmatprep.subr.mxu0 0.0
      %950 = vmatpush1.msra.mxu0 0.0
      %951 = vmatprep.subr.mxu0 0.0
      %952 = vmatpush1.msra.mxu0 0.0
      %953 = vmatprep.subr.mxu0 0.0
      %954 = vmatpush1.msra.mxu0 0.0
      %955 = vmatprep.subr.mxu0 0.0
      %956 = vmatpush1.msra.mxu0 0.0
      %957 = vmatprep.subr.mxu0 0.0
      %958 = vmatpush1.msra.mxu0 0.0
      %959 = vmatprep.subr.mxu0 0.0
      %960 = vmatpush1.msra.mxu0 0.0
      %961 = vmatprep.subr.mxu0 0.0
      %962 = vmatpush1.msra.mxu0 0.0
      %963 = vmatprep.subr.mxu0 0.0
      %964 = vmatpush1.msra.mxu0 0.0
      %965 = vmatprep.subr.mxu0 0.0
      %966 = vmatpush1.msra.mxu0 0.0
      %967 = vmatprep.subr.mxu0 0.0
      %968 = vmatpush1.msra.mxu0 0.0
      %969 = vmatprep.subr.mxu0 0.0
      %970 = vmatpush1.msra.mxu0 0.0
      %971 = vmatprep.mubr.f32.mxu0 0.0
      %972 = vmatmul.mubr.f32.gmra.mrb[0].mxu0 %v899
      %v973 = vpop.f32.mrb[0].mxu0
      %v974 = vadd.f32 0.0, %v973
      %v975 = vpop.f32.mrb[0].mxu0
      %976 = vmatprep.mubr.f32.mxu0 0.0
      %977 = vmatmul.mubr.f32.gmra.mrb[0].mxu0 %v902
      %v978 = vpop.f32.mrb[0].mxu0
      %v979 = vadd.f32 0.0, %v978
      %v980 = vpop.f32.mrb[0].mxu0
      %981 = vmatprep.mubr.f32.mxu0 0.0
      %982 = vmatmul.mubr.f32.gmra.mrb[0].mxu0 %v905
      %v983 = vpop.f32.mrb[0].mxu0
      %v984 = vadd.f32 0.0, %v983
      %v985 = vpop.f32.mrb[0].mxu0
      %986 = vdwg.mxu0
      %v988 = vsel %vm127, %v892, 0
      %v991 = vsel %vm127, %v893, 0
      %v994 = vsel %vm127, %v894, 0
      %996 = vmatprep.subr.mxu0 0.0
      %997 = vmatpush1.msra.mxu0 %v102
      %998 = vmatprep.subr.mxu0 0.0
      %999 = vmatpush1.msra.mxu0 %v103
      %1000 = vmatprep.subr.mxu0 0.0
      %1001 = vmatpush1.msra.mxu0 %v104
      %1002 = vmatprep.subr.mxu0 0.0
      %1003 = vmatpush1.msra.mxu0 %v105
      %1004 = vmatprep.subr.mxu0 0.0
      %1005 = vmatpush1.msra.mxu0 %v106
      %1006 = vmatprep.subr.mxu0 0.0
      %1007 = vmatpush1.msra.mxu0 %v107
      %1008 = vmatprep.subr.mxu0 0.0
      %1009 = vmatpush1.msra.mxu0 %v108
      %1010 = vmatprep.subr.mxu0 0.0
      %1011 = vmatpush1.msra.mxu0 %v109
      %1012 = vmatprep.subr.mxu0 0.0
      %1013 = vmatpush1.msra.mxu0 %v110
      %1014 = vmatprep.subr.mxu0 0.0
      %1015 = vmatpush1.msra.mxu0 %v111
      %1016 = vmatprep.subr.mxu0 0.0
      %1017 = vmatpush1.msra.mxu0 %v112
      %1018 = vmatprep.subr.mxu0 0.0
      %1019 = vmatpush1.msra.mxu0 %v113
      %1020 = vmatprep.subr.mxu0 0.0
      %1021 = vmatpush1.msra.mxu0 %v114
      %1022 = vmatprep.subr.mxu0 0.0
      %1023 = vmatpush1.msra.mxu0 %v139
      %1024 = vmatprep.subr.mxu0 0.0
      %1025 = vmatpush1.msra.mxu0 0.0
      %1026 = vmatprep.subr.mxu0 0.0
      %1027 = vmatpush1.msra.mxu0 0.0
      %1028 = vmatprep.subr.mxu0 0.0
      %1029 = vmatpush1.msra.mxu0 0.0
      %1030 = vmatprep.subr.mxu0 0.0
      %1031 = vmatpush1.msra.mxu0 0.0
      %1032 = vmatprep.subr.mxu0 0.0
      %1033 = vmatpush1.msra.mxu0 0.0
      %1034 = vmatprep.subr.mxu0 0.0
      %1035 = vmatpush1.msra.mxu0 0.0
      %1036 = vmatprep.subr.mxu0 0.0
      %1037 = vmatpush1.msra.mxu0 0.0
      %1038 = vmatprep.subr.mxu0 0.0
      %1039 = vmatpush1.msra.mxu0 0.0
      %1040 = vmatprep.subr.mxu0 0.0
      %1041 = vmatpush1.msra.mxu0 0.0
      %1042 = vmatprep.subr.mxu0 0.0
      %1043 = vmatpush1.msra.mxu0 0.0
      %1044 = vmatprep.subr.mxu0 0.0
      %1045 = vmatpush1.msra.mxu0 0.0
      %1046 = vmatprep.subr.mxu0 0.0
      %1047 = vmatpush1.msra.mxu0 0.0
      %1048 = vmatprep.subr.mxu0 0.0
      %1049 = vmatpush1.msra.mxu0 0.0
      %1050 = vmatprep.subr.mxu0 0.0
      %1051 = vmatpush1.msra.mxu0 0.0
      %1052 = vmatprep.subr.mxu0 0.0
      %1053 = vmatpush1.msra.mxu0 0.0
      %1054 = vmatprep.subr.mxu0 0.0
      %1055 = vmatpush1.msra.mxu0 0.0
      %1056 = vmatprep.subr.mxu0 0.0
      %1057 = vmatpush1.msra.mxu0 0.0
      %1058 = vmatprep.subr.mxu0 0.0
      %1059 = vmatpush1.msra.mxu0 0.0
      %1060 = vmatprep.mubr.f32.mxu0 0.0
      %1061 = vmatmul.mubr.f32.gmra.mrb[0].mxu0 %v988
      %v1062 = vpop.f32.mrb[0].mxu0
      %v1063 = vadd.f32 %v974, %v1062
      %v1064 = vpop.f32.mrb[0].mxu0
      %1065 = vmatprep.mubr.f32.mxu0 0.0
      %1066 = vmatmul.mubr.f32.gmra.mrb[0].mxu0 %v991
      %v1067 = vpop.f32.mrb[0].mxu0
      %v1068 = vadd.f32 %v979, %v1067
      %v1069 = vpop.f32.mrb[0].mxu0
      %1070 = vmatprep.mubr.f32.mxu0 0.0
      %1071 = vmatmul.mubr.f32.gmra.mrb[0].mxu0 %v994
      %v1072 = vpop.f32.mrb[0].mxu0
      %v1073 = vadd.f32 %v984, %v1072
      %v1074 = vpop.f32.mrb[0].mxu0
      %1075 = vdwg.mxu0
      %v1076 = vsub.f32 %v1063, %v43
      %v1077 = vsub.f32 %v1068, %v44
      %v1078 = vsub.f32 %v1073, %v45
      %v1079 = vmul.f32 %v40, %v1076
      %v1080 = vmul.f32 %v41, %v1077
      %v1081 = vmul.f32 %v42, %v1078
      %v1082 = vxor.u32 %v1079, 2147483648
      %v1083 = vxor.u32 %v1080, 2147483648
      %v1084 = vxor.u32 %v1081, 2147483648
      %v1085 = vmul.f32 %v1082, 1.442695
      %v1086 = vpow.pop %v1085
      %v1087 = vmul.f32 %v1083, 1.442695
      %v1088 = vpow.pop %v1087
      %v1089 = vmul.f32 %v1084, 1.442695
      %v1090 = vpow.pop %v1089
      %v1091 = vadd.f32 %v1086, 1.0
      %v1092 = vadd.f32 %v1088, 1.0
      %v1093 = vadd.f32 %v1090, 1.0
      %v1094 = vrcp.pop %v1091
      %v1095 = vmul.f32 1.0, %v1094
      %v1096 = vrcp.pop %v1092
      %v1097 = vmul.f32 1.0, %v1096
      %v1098 = vrcp.pop %v1093
      %v1099 = vmul.f32 1.0, %v1098
      %v1100 = vmul.f32 %v61, %v882
      %v1101 = vadd.f32 %v92, %v1100
      %v1102 = vmul.f32 %v46, %v1095
      %v1103 = vmul.f32 %v47, %v1097
      %v1104 = vmul.f32 %v48, %v1099
      %v1105 = vsel %vm127, %v1102, 0.0
      %v1106 = vsel %vm127, %v1103, 0.0
      %v1107 = vadd.f32 %v1105, %v1106
      %v1108 = vsel %vm342, %v1104, 0.0
      %v1109 = vadd.f32 %v1107, %v1108
      %v1110 = vrot.slane %v1109, 4
      %v1111 = vadd.f32 %v1109, %v1110
      %v1112 = vrot.slane %v1111, 2
      %v1113 = vadd.f32 %v1111, %v1112
      %v1114 = vrot.slane %v1113, 1
      %v1115 = vadd.f32 %v1113, %v1114
      %v1116 = vadd.f32 %v1101, %v1115
      %v1117 = vmul.f32 %v49, %v1095
      %v1118 = vmul.f32 %v50, %v1097
      %v1119 = vmul.f32 %v51, %v1099
      %v1120 = vsel %vm127, %v1117, 0.0
      %v1121 = vsel %vm127, %v1118, 0.0
      %v1122 = vadd.f32 %v1120, %v1121
      %v1123 = vsel %vm342, %v1119, 0.0
      %v1124 = vadd.f32 %v1122, %v1123
      %v1125 = vrot.slane %v1124, 4
      %v1126 = vadd.f32 %v1124, %v1125
      %v1127 = vrot.slane %v1126, 2
      %v1128 = vadd.f32 %v1126, %v1127
      %v1129 = vrot.slane %v1128, 1
      %v1130 = vadd.f32 %v1128, %v1129
      %v1131 = vadd.f32 %v101, %v1130
      %v1132 = vadd.f32 %v1131, 1e-08
      %v1133 = vrcp.pop %v1132
      %v1134 = vmul.f32 %v1132, %v1133
      %v1135 = vsub.f32 2.0, %v1134
      %v1136 = vmul.f32 %v1133, %v1135
      %v1137 = vmul.f32 %v1116, %v1136
      %v1138 = vlaneseq
      %v1139 = vshrl.u32 %v1138, 7
      %v1140 = vsub.s32 0, %v1139
      %v1141 = vrot.slane %v1137, %v1140
      %v1142 = vmul.f32 %v1141, %v52
      %v1143 = vmul.f32 %v1141, %v53
      %v1144 = vmul.f32 %v1141, %v54
      %v1145 = vpack.c.bf16 %v1143, %v1142
      %v1146 = vpack.c.bf16 %v1144, %v1144
      %v1147 = vunpack.c.l.bf16 %v1145
      %v1148 = vunpack.c.h.bf16 %v1145
      %v1149 = vunpack.c.l.bf16 %v1146
      %v1150 = vsub.f32 %v1142, %v1147
      %v1151 = vsub.f32 %v1143, %v1148
      %v1152 = vsub.f32 %v1144, %v1149
      %v1154 = vsel %vm127, %v1150, 0
      %v1157 = vsel %vm127, %v1151, 0
      %v1160 = vsel %vm127, %v1152, 0
      %1162 = vmatprep.subr.mxu0 0.0
      %1163 = vmatpush1.msra.mxu0 %v102
      %1164 = vmatprep.subr.mxu0 0.0
      %1165 = vmatpush1.msra.mxu0 %v103
      %1166 = vmatprep.subr.mxu0 0.0
      %1167 = vmatpush1.msra.mxu0 %v104
      %1168 = vmatprep.subr.mxu0 0.0
      %1169 = vmatpush1.msra.mxu0 %v105
      %1170 = vmatprep.subr.mxu0 0.0
      %1171 = vmatpush1.msra.mxu0 %v106
      %1172 = vmatprep.subr.mxu0 0.0
      %1173 = vmatpush1.msra.mxu0 %v107
      %1174 = vmatprep.subr.mxu0 0.0
      %1175 = vmatpush1.msra.mxu0 %v108
      %1176 = vmatprep.subr.mxu0 0.0
      %1177 = vmatpush1.msra.mxu0 %v109
      %1178 = vmatprep.subr.mxu0 0.0
      %1179 = vmatpush1.msra.mxu0 %v110
      %1180 = vmatprep.subr.mxu0 0.0
      %1181 = vmatpush1.msra.mxu0 %v111
      %1182 = vmatprep.subr.mxu0 0.0
      %1183 = vmatpush1.msra.mxu0 %v112
      %1184 = vmatprep.subr.mxu0 0.0
      %1185 = vmatpush1.msra.mxu0 %v113
      %1186 = vmatprep.subr.mxu0 0.0
      %1187 = vmatpush1.msra.mxu0 %v114
      %1188 = vmatprep.subr.mxu0 0.0
      %1189 = vmatpush1.msra.mxu0 %v139
      %1190 = vmatprep.subr.mxu0 0.0
      %1191 = vmatpush1.msra.mxu0 0.0
      %1192 = vmatprep.subr.mxu0 0.0
      %1193 = vmatpush1.msra.mxu0 0.0
      %1194 = vmatprep.subr.mxu0 0.0
      %1195 = vmatpush1.msra.mxu0 0.0
      %1196 = vmatprep.subr.mxu0 0.0
      %1197 = vmatpush1.msra.mxu0 0.0
      %1198 = vmatprep.subr.mxu0 0.0
      %1199 = vmatpush1.msra.mxu0 0.0
      %1200 = vmatprep.subr.mxu0 0.0
      %1201 = vmatpush1.msra.mxu0 0.0
      %1202 = vmatprep.subr.mxu0 0.0
      %1203 = vmatpush1.msra.mxu0 0.0
      %1204 = vmatprep.subr.mxu0 0.0
      %1205 = vmatpush1.msra.mxu0 0.0
      %1206 = vmatprep.subr.mxu0 0.0
      %1207 = vmatpush1.msra.mxu0 0.0
      %1208 = vmatprep.subr.mxu0 0.0
      %1209 = vmatpush1.msra.mxu0 0.0
      %1210 = vmatprep.subr.mxu0 0.0
      %1211 = vmatpush1.msra.mxu0 0.0
      %1212 = vmatprep.subr.mxu0 0.0
      %1213 = vmatpush1.msra.mxu0 0.0
      %1214 = vmatprep.subr.mxu0 0.0
      %1215 = vmatpush1.msra.mxu0 0.0
      %1216 = vmatprep.subr.mxu0 0.0
      %1217 = vmatpush1.msra.mxu0 0.0
      %1218 = vmatprep.subr.mxu0 0.0
      %1219 = vmatpush1.msra.mxu0 0.0
      %1220 = vmatprep.subr.mxu0 0.0
      %1221 = vmatpush1.msra.mxu0 0.0
      %1222 = vmatprep.subr.mxu0 0.0
      %1223 = vmatpush1.msra.mxu0 0.0
      %1224 = vmatprep.subr.mxu0 0.0
      %1225 = vmatpush1.msra.mxu0 0.0
      %1226 = vmatprep.mubr.f32.mxu0 0.0
      %1227 = vmatmul.mubr.f32.gmra.mrb[0].mxu0 %v1154
      %v1228 = vpop.f32.mrb[0].mxu0
      %v1229 = vadd.f32 0.0, %v1228
      %v1230 = vpop.f32.mrb[0].mxu0
      %1231 = vmatprep.mubr.f32.mxu0 0.0
      %1232 = vmatmul.mubr.f32.gmra.mrb[0].mxu0 %v1157
      %v1233 = vpop.f32.mrb[0].mxu0
      %v1234 = vadd.f32 0.0, %v1233
      %v1235 = vpop.f32.mrb[0].mxu0
      %1236 = vmatprep.mubr.f32.mxu0 0.0
      %1237 = vmatmul.mubr.f32.gmra.mrb[0].mxu0 %v1160
      %v1238 = vpop.f32.mrb[0].mxu0
      %v1239 = vadd.f32 0.0, %v1238
      %v1240 = vpop.f32.mrb[0].mxu0
      %1241 = vdwg.mxu0
      %v1243 = vsel %vm127, %v1147, 0
      %v1246 = vsel %vm127, %v1148, 0
      %v1249 = vsel %vm127, %v1149, 0
      %1251 = vmatprep.subr.mxu0 0.0
      %1252 = vmatpush1.msra.mxu0 %v102
      %1253 = vmatprep.subr.mxu0 0.0
      %1254 = vmatpush1.msra.mxu0 %v103
      %1255 = vmatprep.subr.mxu0 0.0
      %1256 = vmatpush1.msra.mxu0 %v104
      %1257 = vmatprep.subr.mxu0 0.0
      %1258 = vmatpush1.msra.mxu0 %v105
      %1259 = vmatprep.subr.mxu0 0.0
      %1260 = vmatpush1.msra.mxu0 %v106
      %1261 = vmatprep.subr.mxu0 0.0
      %1262 = vmatpush1.msra.mxu0 %v107
      %1263 = vmatprep.subr.mxu0 0.0
      %1264 = vmatpush1.msra.mxu0 %v108
      %1265 = vmatprep.subr.mxu0 0.0
      %1266 = vmatpush1.msra.mxu0 %v109
      %1267 = vmatprep.subr.mxu0 0.0
      %1268 = vmatpush1.msra.mxu0 %v110
      %1269 = vmatprep.subr.mxu0 0.0
      %1270 = vmatpush1.msra.mxu0 %v111
      %1271 = vmatprep.subr.mxu0 0.0
      %1272 = vmatpush1.msra.mxu0 %v112
      %1273 = vmatprep.subr.mxu0 0.0
      %1274 = vmatpush1.msra.mxu0 %v113
      %1275 = vmatprep.subr.mxu0 0.0
      %1276 = vmatpush1.msra.mxu0 %v114
      %1277 = vmatprep.subr.mxu0 0.0
      %1278 = vmatpush1.msra.mxu0 %v139
      %1279 = vmatprep.subr.mxu0 0.0
      %1280 = vmatpush1.msra.mxu0 0.0
      %1281 = vmatprep.subr.mxu0 0.0
      %1282 = vmatpush1.msra.mxu0 0.0
      %1283 = vmatprep.subr.mxu0 0.0
      %1284 = vmatpush1.msra.mxu0 0.0
      %1285 = vmatprep.subr.mxu0 0.0
      %1286 = vmatpush1.msra.mxu0 0.0
      %1287 = vmatprep.subr.mxu0 0.0
      %1288 = vmatpush1.msra.mxu0 0.0
      %1289 = vmatprep.subr.mxu0 0.0
      %1290 = vmatpush1.msra.mxu0 0.0
      %1291 = vmatprep.subr.mxu0 0.0
      %1292 = vmatpush1.msra.mxu0 0.0
      %1293 = vmatprep.subr.mxu0 0.0
      %1294 = vmatpush1.msra.mxu0 0.0
      %1295 = vmatprep.subr.mxu0 0.0
      %1296 = vmatpush1.msra.mxu0 0.0
      %1297 = vmatprep.subr.mxu0 0.0
      %1298 = vmatpush1.msra.mxu0 0.0
      %1299 = vmatprep.subr.mxu0 0.0
      %1300 = vmatpush1.msra.mxu0 0.0
      %1301 = vmatprep.subr.mxu0 0.0
      %1302 = vmatpush1.msra.mxu0 0.0
      %1303 = vmatprep.subr.mxu0 0.0
      %1304 = vmatpush1.msra.mxu0 0.0
      %1305 = vmatprep.subr.mxu0 0.0
      %1306 = vmatpush1.msra.mxu0 0.0
      %1307 = vmatprep.subr.mxu0 0.0
      %1308 = vmatpush1.msra.mxu0 0.0
      %1309 = vmatprep.subr.mxu0 0.0
      %1310 = vmatpush1.msra.mxu0 0.0
      %1311 = vmatprep.subr.mxu0 0.0
      %1312 = vmatpush1.msra.mxu0 0.0
      %1313 = vmatprep.subr.mxu0 0.0
      %1314 = vmatpush1.msra.mxu0 0.0
      %1315 = vmatprep.mubr.f32.mxu0 0.0
      %1316 = vmatmul.mubr.f32.gmra.mrb[0].mxu0 %v1243
      %v1317 = vpop.f32.mrb[0].mxu0
      %v1318 = vadd.f32 %v1229, %v1317
      %v1319 = vpop.f32.mrb[0].mxu0
      %1320 = vmatprep.mubr.f32.mxu0 0.0
      %1321 = vmatmul.mubr.f32.gmra.mrb[0].mxu0 %v1246
      %v1322 = vpop.f32.mrb[0].mxu0
      %v1323 = vadd.f32 %v1234, %v1322
      %v1324 = vpop.f32.mrb[0].mxu0
      %1325 = vmatprep.mubr.f32.mxu0 0.0
      %1326 = vmatmul.mubr.f32.gmra.mrb[0].mxu0 %v1249
      %v1327 = vpop.f32.mrb[0].mxu0
      %v1328 = vadd.f32 %v1239, %v1327
      %v1329 = vpop.f32.mrb[0].mxu0
      %1330 = vdwg.mxu0
      %v1331 = vsub.f32 %v1318, %v43
      %v1332 = vsub.f32 %v1323, %v44
      %v1333 = vsub.f32 %v1328, %v45
      %v1334 = vmul.f32 %v40, %v1331
      %v1335 = vmul.f32 %v41, %v1332
      %v1336 = vmul.f32 %v42, %v1333
      %v1337 = vxor.u32 %v1334, 2147483648
      %v1338 = vxor.u32 %v1335, 2147483648
      %v1339 = vxor.u32 %v1336, 2147483648
      %v1340 = vmul.f32 %v1337, 1.442695
      %v1341 = vpow.pop %v1340
      %v1342 = vmul.f32 %v1338, 1.442695
      %v1343 = vpow.pop %v1342
      %v1344 = vmul.f32 %v1339, 1.442695
      %v1345 = vpow.pop %v1344
      %v1346 = vadd.f32 %v1341, 1.0
      %v1347 = vadd.f32 %v1343, 1.0
      %v1348 = vadd.f32 %v1345, 1.0
      %v1349 = vrcp.pop %v1346
      %v1350 = vmul.f32 1.0, %v1349
      %v1351 = vrcp.pop %v1347
      %v1352 = vmul.f32 1.0, %v1351
      %v1353 = vrcp.pop %v1348
      %v1354 = vmul.f32 1.0, %v1353
      %v1355 = vmul.f32 %v61, %v1137
      %v1356 = vadd.f32 %v92, %v1355
      %v1357 = vmul.f32 %v46, %v1350
      %v1358 = vmul.f32 %v47, %v1352
      %v1359 = vmul.f32 %v48, %v1354
      %v1360 = vsel %vm127, %v1357, 0.0
      %v1361 = vsel %vm127, %v1358, 0.0
      %v1362 = vadd.f32 %v1360, %v1361
      %v1363 = vsel %vm342, %v1359, 0.0
      %v1364 = vadd.f32 %v1362, %v1363
      %v1365 = vrot.slane %v1364, 4
      %v1366 = vadd.f32 %v1364, %v1365
      %v1367 = vrot.slane %v1366, 2
      %v1368 = vadd.f32 %v1366, %v1367
      %v1369 = vrot.slane %v1368, 1
      %v1370 = vadd.f32 %v1368, %v1369
      %v1371 = vadd.f32 %v1356, %v1370
      %v1372 = vmul.f32 %v49, %v1350
      %v1373 = vmul.f32 %v50, %v1352
      %v1374 = vmul.f32 %v51, %v1354
      %v1375 = vsel %vm127, %v1372, 0.0
      %v1376 = vsel %vm127, %v1373, 0.0
      %v1377 = vadd.f32 %v1375, %v1376
      %v1378 = vsel %vm342, %v1374, 0.0
      %v1379 = vadd.f32 %v1377, %v1378
      %v1380 = vrot.slane %v1379, 4
      %v1381 = vadd.f32 %v1379, %v1380
      %v1382 = vrot.slane %v1381, 2
      %v1383 = vadd.f32 %v1381, %v1382
      %v1384 = vrot.slane %v1383, 1
      %v1385 = vadd.f32 %v1383, %v1384
      %v1386 = vadd.f32 %v101, %v1385
      %v1387 = vadd.f32 %v1386, 1e-08
      %v1388 = vrcp.pop %v1387
      %v1389 = vmul.f32 %v1387, %v1388
      %v1390 = vsub.f32 2.0, %v1389
      %v1391 = vmul.f32 %v1388, %v1390
      %v1392 = vmul.f32 %v1371, %v1391
      %v1393 = vlaneseq
      %v1394 = vshrl.u32 %v1393, 7
      %v1395 = vsub.s32 0, %v1394
      %v1396 = vrot.slane %v1392, %v1395
      %v1397 = vmul.f32 %v1396, %v52
      %v1398 = vmul.f32 %v1396, %v53
      %v1399 = vmul.f32 %v1396, %v54
      %v1400 = vpack.c.bf16 %v1398, %v1397
      %v1401 = vpack.c.bf16 %v1399, %v1399
      %v1402 = vunpack.c.l.bf16 %v1400
      %v1403 = vunpack.c.h.bf16 %v1400
      %v1404 = vunpack.c.l.bf16 %v1401
      %v1405 = vsub.f32 %v1397, %v1402
      %v1406 = vsub.f32 %v1398, %v1403
      %v1407 = vsub.f32 %v1399, %v1404
      %v1409 = vsel %vm127, %v1405, 0
      %v1412 = vsel %vm127, %v1406, 0
      %v1415 = vsel %vm127, %v1407, 0
      %1417 = vmatprep.subr.mxu0 0.0
      %1418 = vmatpush1.msra.mxu0 %v102
      %1419 = vmatprep.subr.mxu0 0.0
      %1420 = vmatpush1.msra.mxu0 %v103
      %1421 = vmatprep.subr.mxu0 0.0
      %1422 = vmatpush1.msra.mxu0 %v104
      %1423 = vmatprep.subr.mxu0 0.0
      %1424 = vmatpush1.msra.mxu0 %v105
      %1425 = vmatprep.subr.mxu0 0.0
      %1426 = vmatpush1.msra.mxu0 %v106
      %1427 = vmatprep.subr.mxu0 0.0
      %1428 = vmatpush1.msra.mxu0 %v107
      %1429 = vmatprep.subr.mxu0 0.0
      %1430 = vmatpush1.msra.mxu0 %v108
      %1431 = vmatprep.subr.mxu0 0.0
      %1432 = vmatpush1.msra.mxu0 %v109
      %1433 = vmatprep.subr.mxu0 0.0
      %1434 = vmatpush1.msra.mxu0 %v110
      %1435 = vmatprep.subr.mxu0 0.0
      %1436 = vmatpush1.msra.mxu0 %v111
      %1437 = vmatprep.subr.mxu0 0.0
      %1438 = vmatpush1.msra.mxu0 %v112
      %1439 = vmatprep.subr.mxu0 0.0
      %1440 = vmatpush1.msra.mxu0 %v113
      %1441 = vmatprep.subr.mxu0 0.0
      %1442 = vmatpush1.msra.mxu0 %v114
      %1443 = vmatprep.subr.mxu0 0.0
      %1444 = vmatpush1.msra.mxu0 %v139
      %1445 = vmatprep.subr.mxu0 0.0
      %1446 = vmatpush1.msra.mxu0 0.0
      %1447 = vmatprep.subr.mxu0 0.0
      %1448 = vmatpush1.msra.mxu0 0.0
      %1449 = vmatprep.subr.mxu0 0.0
      %1450 = vmatpush1.msra.mxu0 0.0
      %1451 = vmatprep.subr.mxu0 0.0
      %1452 = vmatpush1.msra.mxu0 0.0
      %1453 = vmatprep.subr.mxu0 0.0
      %1454 = vmatpush1.msra.mxu0 0.0
      %1455 = vmatprep.subr.mxu0 0.0
      %1456 = vmatpush1.msra.mxu0 0.0
      %1457 = vmatprep.subr.mxu0 0.0
      %1458 = vmatpush1.msra.mxu0 0.0
      %1459 = vmatprep.subr.mxu0 0.0
      %1460 = vmatpush1.msra.mxu0 0.0
      %1461 = vmatprep.subr.mxu0 0.0
      %1462 = vmatpush1.msra.mxu0 0.0
      %1463 = vmatprep.subr.mxu0 0.0
      %1464 = vmatpush1.msra.mxu0 0.0
      %1465 = vmatprep.subr.mxu0 0.0
      %1466 = vmatpush1.msra.mxu0 0.0
      %1467 = vmatprep.subr.mxu0 0.0
      %1468 = vmatpush1.msra.mxu0 0.0
      %1469 = vmatprep.subr.mxu0 0.0
      %1470 = vmatpush1.msra.mxu0 0.0
      %1471 = vmatprep.subr.mxu0 0.0
      %1472 = vmatpush1.msra.mxu0 0.0
      %1473 = vmatprep.subr.mxu0 0.0
      %1474 = vmatpush1.msra.mxu0 0.0
      %1475 = vmatprep.subr.mxu0 0.0
      %1476 = vmatpush1.msra.mxu0 0.0
      %1477 = vmatprep.subr.mxu0 0.0
      %1478 = vmatpush1.msra.mxu0 0.0
      %1479 = vmatprep.subr.mxu0 0.0
      %1480 = vmatpush1.msra.mxu0 0.0
      %1481 = vmatprep.mubr.f32.mxu0 0.0
      %1482 = vmatmul.mubr.f32.gmra.mrb[0].mxu0 %v1409
      %v1483 = vpop.f32.mrb[0].mxu0
      %v1484 = vadd.f32 0.0, %v1483
      %v1485 = vpop.f32.mrb[0].mxu0
      %1486 = vmatprep.mubr.f32.mxu0 0.0
      %1487 = vmatmul.mubr.f32.gmra.mrb[0].mxu0 %v1412
      %v1488 = vpop.f32.mrb[0].mxu0
      %v1489 = vadd.f32 0.0, %v1488
      %v1490 = vpop.f32.mrb[0].mxu0
      %1491 = vmatprep.mubr.f32.mxu0 0.0
      %1492 = vmatmul.mubr.f32.gmra.mrb[0].mxu0 %v1415
      %v1493 = vpop.f32.mrb[0].mxu0
      %v1494 = vadd.f32 0.0, %v1493
      %v1495 = vpop.f32.mrb[0].mxu0
      %1496 = vdwg.mxu0
      %v1498 = vsel %vm127, %v1402, 0
      %v1501 = vsel %vm127, %v1403, 0
      %v1504 = vsel %vm127, %v1404, 0
      %1506 = vmatprep.subr.mxu0 0.0
      %1507 = vmatpush1.msra.mxu0 %v102
      %1508 = vmatprep.subr.mxu0 0.0
      %1509 = vmatpush1.msra.mxu0 %v103
      %1510 = vmatprep.subr.mxu0 0.0
      %1511 = vmatpush1.msra.mxu0 %v104
      %1512 = vmatprep.subr.mxu0 0.0
      %1513 = vmatpush1.msra.mxu0 %v105
      %1514 = vmatprep.subr.mxu0 0.0
      %1515 = vmatpush1.msra.mxu0 %v106
      %1516 = vmatprep.subr.mxu0 0.0
      %1517 = vmatpush1.msra.mxu0 %v107
      %1518 = vmatprep.subr.mxu0 0.0
      %1519 = vmatpush1.msra.mxu0 %v108
      %1520 = vmatprep.subr.mxu0 0.0
      %1521 = vmatpush1.msra.mxu0 %v109
      %1522 = vmatprep.subr.mxu0 0.0
      %1523 = vmatpush1.msra.mxu0 %v110
      %1524 = vmatprep.subr.mxu0 0.0
      %1525 = vmatpush1.msra.mxu0 %v111
      %1526 = vmatprep.subr.mxu0 0.0
      %1527 = vmatpush1.msra.mxu0 %v112
      %1528 = vmatprep.subr.mxu0 0.0
      %1529 = vmatpush1.msra.mxu0 %v113
      %1530 = vmatprep.subr.mxu0 0.0
      %1531 = vmatpush1.msra.mxu0 %v114
      %1532 = vmatprep.subr.mxu0 0.0
      %1533 = vmatpush1.msra.mxu0 %v139
      %1534 = vmatprep.subr.mxu0 0.0
      %1535 = vmatpush1.msra.mxu0 0.0
      %1536 = vmatprep.subr.mxu0 0.0
      %1537 = vmatpush1.msra.mxu0 0.0
      %1538 = vmatprep.subr.mxu0 0.0
      %1539 = vmatpush1.msra.mxu0 0.0
      %1540 = vmatprep.subr.mxu0 0.0
      %1541 = vmatpush1.msra.mxu0 0.0
      %1542 = vmatprep.subr.mxu0 0.0
      %1543 = vmatpush1.msra.mxu0 0.0
      %1544 = vmatprep.subr.mxu0 0.0
      %1545 = vmatpush1.msra.mxu0 0.0
      %1546 = vmatprep.subr.mxu0 0.0
      %1547 = vmatpush1.msra.mxu0 0.0
      %1548 = vmatprep.subr.mxu0 0.0
      %1549 = vmatpush1.msra.mxu0 0.0
      %1550 = vmatprep.subr.mxu0 0.0
      %1551 = vmatpush1.msra.mxu0 0.0
      %1552 = vmatprep.subr.mxu0 0.0
      %1553 = vmatpush1.msra.mxu0 0.0
      %1554 = vmatprep.subr.mxu0 0.0
      %1555 = vmatpush1.msra.mxu0 0.0
      %1556 = vmatprep.subr.mxu0 0.0
      %1557 = vmatpush1.msra.mxu0 0.0
      %1558 = vmatprep.subr.mxu0 0.0
      %1559 = vmatpush1.msra.mxu0 0.0
      %1560 = vmatprep.subr.mxu0 0.0
      %1561 = vmatpush1.msra.mxu0 0.0
      %1562 = vmatprep.subr.mxu0 0.0
      %1563 = vmatpush1.msra.mxu0 0.0
      %1564 = vmatprep.subr.mxu0 0.0
      %1565 = vmatpush1.msra.mxu0 0.0
      %1566 = vmatprep.subr.mxu0 0.0
      %1567 = vmatpush1.msra.mxu0 0.0
      %1568 = vmatprep.subr.mxu0 0.0
      %1569 = vmatpush1.msra.mxu0 0.0
      %1570 = vmatprep.mubr.f32.mxu0 0.0
      %1571 = vmatmul.mubr.f32.gmra.mrb[0].mxu0 %v1498
      %v1572 = vpop.f32.mrb[0].mxu0
      %v1573 = vadd.f32 %v1484, %v1572
      %v1574 = vpop.f32.mrb[0].mxu0
      %1575 = vmatprep.mubr.f32.mxu0 0.0
      %1576 = vmatmul.mubr.f32.gmra.mrb[0].mxu0 %v1501
      %v1577 = vpop.f32.mrb[0].mxu0
      %v1578 = vadd.f32 %v1489, %v1577
      %v1579 = vpop.f32.mrb[0].mxu0
      %1580 = vmatprep.mubr.f32.mxu0 0.0
      %1581 = vmatmul.mubr.f32.gmra.mrb[0].mxu0 %v1504
      %v1582 = vpop.f32.mrb[0].mxu0
      %v1583 = vadd.f32 %v1494, %v1582
      %v1584 = vpop.f32.mrb[0].mxu0
      %1585 = vdwg.mxu0
      %v1586 = vsub.f32 %v1573, %v43
      %v1587 = vsub.f32 %v1578, %v44
      %v1588 = vsub.f32 %v1583, %v45
      %v1589 = vmul.f32 %v40, %v1586
      %v1590 = vmul.f32 %v41, %v1587
      %v1591 = vmul.f32 %v42, %v1588
      %v1592 = vxor.u32 %v1589, 2147483648
      %v1593 = vxor.u32 %v1590, 2147483648
      %v1594 = vxor.u32 %v1591, 2147483648
      %v1595 = vmul.f32 %v1592, 1.442695
      %v1596 = vpow.pop %v1595
      %v1597 = vmul.f32 %v1593, 1.442695
      %v1598 = vpow.pop %v1597
      %v1599 = vmul.f32 %v1594, 1.442695
      %v1600 = vpow.pop %v1599
      %v1601 = vadd.f32 %v1596, 1.0
      %v1602 = vadd.f32 %v1598, 1.0
      %v1603 = vadd.f32 %v1600, 1.0
      %v1604 = vrcp.pop %v1601
      %v1605 = vmul.f32 1.0, %v1604
      %v1606 = vrcp.pop %v1602
      %v1607 = vmul.f32 1.0, %v1606
      %v1608 = vrcp.pop %v1603
      %v1609 = vmul.f32 1.0, %v1608
      %v1610 = vmul.f32 %v61, %v1392
      %v1611 = vadd.f32 %v92, %v1610
      %v1612 = vmul.f32 %v46, %v1605
      %v1613 = vmul.f32 %v47, %v1607
      %v1614 = vmul.f32 %v48, %v1609
      %v1615 = vsel %vm127, %v1612, 0.0
      %v1616 = vsel %vm127, %v1613, 0.0
      %v1617 = vadd.f32 %v1615, %v1616
      %v1618 = vsel %vm342, %v1614, 0.0
      %v1619 = vadd.f32 %v1617, %v1618
      %v1620 = vrot.slane %v1619, 4
      %v1621 = vadd.f32 %v1619, %v1620
      %v1622 = vrot.slane %v1621, 2
      %v1623 = vadd.f32 %v1621, %v1622
      %v1624 = vrot.slane %v1623, 1
      %v1625 = vadd.f32 %v1623, %v1624
      %v1626 = vadd.f32 %v1611, %v1625
      %v1627 = vmul.f32 %v49, %v1605
      %v1628 = vmul.f32 %v50, %v1607
      %v1629 = vmul.f32 %v51, %v1609
      %v1630 = vsel %vm127, %v1627, 0.0
      %v1631 = vsel %vm127, %v1628, 0.0
      %v1632 = vadd.f32 %v1630, %v1631
      %v1633 = vsel %vm342, %v1629, 0.0
      %v1634 = vadd.f32 %v1632, %v1633
      %v1635 = vrot.slane %v1634, 4
      %v1636 = vadd.f32 %v1634, %v1635
      %v1637 = vrot.slane %v1636, 2
      %v1638 = vadd.f32 %v1636, %v1637
      %v1639 = vrot.slane %v1638, 1
      %v1640 = vadd.f32 %v1638, %v1639
      %v1641 = vadd.f32 %v101, %v1640
      %v1642 = vadd.f32 %v1641, 1e-08
      %v1643 = vrcp.pop %v1642
      %v1644 = vmul.f32 %v1642, %v1643
      %v1645 = vsub.f32 2.0, %v1644
      %v1646 = vmul.f32 %v1643, %v1645
      %v1647 = vmul.f32 %v1626, %v1646
      %s1648 = scalar_lea.vmem [#allocation7], %s65
      %vm1649 = vcmask 892928
      %1650 = vst.msk [vmem:[%s1648] sm:$0x1] %vm1649, %v1647
    $region22: #{tpu_custom_call.1} parent=1 // loop_footer
      %s69 = sadd.s32 1, %s65
    $region23: #{tpu_custom_call.1} parent=1 // loop_footer_branch
      %64 = sbr.rel target = $region19
    $region24: #{tpu_custom_call.1} parent=1 // loop_exit
      _
    // Predicated region
    $region25: #{tpu_custom_call.1} parent=1 // pred_check
      _
    $region26: #{tpu_custom_call.1} parent=1 // pred_check_branch
      %1652 = sbr.rel (0) target = $region28
    $region27: #{tpu_custom_call.1} parent=1 // pred_region
      %s1654 = ssub.s32 32, 32
      %1655 = vsyncadd [#allocation4], %s1654
      %s1656 = sshll.u32 [#allocation7], 4
      %s1657 = int_to_ptr.vmem [resolvable:$true] %s1656
      %1662 = dma.vmem_to_hbm [thread:$0]  %s1657, 32, %s2, [#allocation4], 16, 16, 1
    $region28: #{tpu_custom_call.1} parent=1 // pred_fallthru
      _
    // Predicated region
    $region29: #{tpu_custom_call.1} parent=1 // pred_check
      _
    $region30: #{tpu_custom_call.1} parent=1 // pred_check_branch
      %1664 = sbr.rel (0) target = $region32
    $region31: #{tpu_custom_call.1} parent=1 // pred_region
      %1665 = dma.done [#allocation4], 32
    $region32: #{tpu_custom_call.1} parent=1 // pred_fallthru
      _
    %1666 = vsyncpa [#allocation3], 1
    %1667 = vsyncpa [#allocation6], 1
    %1668 = vsyncpa [#allocation4], 1

</llo_original>
